<compile_context>
chip_gen: v5e
topology: v5e:2x2
jax: 0.10.0
libtpu: 0.0.40
codegen_flags: <defaults>
</compile_context>

<pallas_src>
import math

import jax
import jax.numpy as jnp
from jax.experimental import pallas as pl
from jax.experimental.pallas import tpu as pltpu

_VMEM_LIMIT = 48 * 1024 * 1024  # safe on v5e/v6e (128 MiB phys) and v7x (64 MiB phys)


# --------------------------------------------------------------------------
# Small helpers
# --------------------------------------------------------------------------
def _round_up(v, m):
    return ((v + m - 1) // m) * m


def _pad_2d(a, rows, cols):
    r, c = a.shape
    if r == rows and c == cols:
        return a
    return jnp.pad(a, ((0, rows - r), (0, cols - c)))


def _row_tile(dim, prefs=(512, 256, 128)):
    # Prefer >=2 row tiles so the "parallel" M axis can shard across the two
    # TensorCores on v7x; otherwise take the largest tile that divides dim.
    for p in prefs:
        if dim % p == 0 and dim // p >= 2:
            return p
    for p in prefs:
        if dim % p == 0:
            return p
    return dim


def _k_tile(dim, prefs=(1024, 512, 256, 128)):
    # Largest K tile dividing the (padded) node count: fewer K steps amortize the
    # f32 accumulator read-modify-write (v5e single vector-store slot) and the
    # ~0.35us per-grid-step overhead.
    for p in prefs:
        if dim % p == 0:
            return p
    return dim


# --------------------------------------------------------------------------
# Stage 1: fused per-hop linear projections.
#   out[:, :C]        <- lin_0(x)              (f32, written into final buffer)
#   t_rest[:, :]      <- [lin_1(x)|...|lin_H(x)] (compute dtype, for propagation)
# --------------------------------------------------------------------------
def _make_linear_kernel(out_ch, hops):
    def kernel(x_ref, w_ref, b_ref, out0_ref, *rest):
        acc = jnp.dot(x_ref[...], w_ref[...],
                      preferred_element_type=jnp.float32) + b_ref[...]
        if hops >= 1:
            (trest_ref,) = rest
            out0_ref[...] = acc[:, :out_ch].astype(out0_ref.dtype)
            trest_ref[...] = acc[:, out_ch:].astype(trest_ref.dtype)
        else:
            out0_ref[...] = acc.astype(out0_ref.dtype)

    return kernel


def _mixhop_linear(x, w_all, b_all, *, out_ch, hops, tm, cdt):
    m, k_in = x.shape
    w_total = w_all.shape[1]
    assert w_total == (hops + 1) * out_ch and m % tm == 0

    out_shapes = [jax.ShapeDtypeStruct((m, w_total), jnp.float32)]
    out_specs = [pl.BlockSpec((tm, out_ch), lambda i: (i, 0))]
    if hops >= 1:
        out_shapes.append(jax.ShapeDtypeStruct((m, hops * out_ch), cdt))
        out_specs.append(pl.BlockSpec((tm, hops * out_ch), lambda i: (i, 0)))

    cb = jnp.dtype(cdt).itemsize
    cost = pl.CostEstimate(
        flops=int(2 * m * k_in * w_total),
        transcendentals=0,
        bytes_accessed=int(m * k_in * cb + k_in * w_total * cb + w_total * 4
                           + m * out_ch * 4 + m * hops * out_ch * cb),
    )
    res = pl.pallas_call(
        _make_linear_kernel(out_ch, hops),
        out_shape=tuple(out_shapes),
        grid_spec=pltpu.PrefetchScalarGridSpec(
            num_scalar_prefetch=0,
            grid=(m // tm,),
            in_specs=[
                pl.BlockSpec((tm, k_in), lambda i: (i, 0)),
                pl.BlockSpec((k_in, w_total), lambda i: (0, 0)),  # grid-invariant
                pl.BlockSpec((1, w_total), lambda i: (0, 0)),     # grid-invariant
            ],
            out_specs=tuple(out_specs),
        ),
        compiler_params=pltpu.CompilerParams(
            dimension_semantics=("parallel",),
            vmem_limit_bytes=_VMEM_LIMIT,
        ),
        cost_estimate=cost,
    )(x, w_all, b_all)
    if hops >= 1:
        return res[0], res[1]
    return res[0], None


# --------------------------------------------------------------------------
# Stage 2: one propagation step.  Computes A @ cur with a full-width N tile,
# writes the finished hop's C columns directly into the aliased final output
# buffer (f32) at column-block offset `hop`, and the remaining columns into a
# fresh slab for the next step.
# --------------------------------------------------------------------------
def _make_prop_kernel(out_ch, has_next):
    def kernel(a_ref, cur_ref, out_hbm_ref, out_ref, *rest):
        del out_hbm_ref  # aliased final-output buffer; written only through out_ref
        if has_next:
            next_ref, acc_ref = rest
        else:
            (acc_ref,) = rest

        @pl.when(pl.program_id(1) == 0)
        def _():
            acc_ref[...] = jnp.zeros_like(acc_ref)

        acc_ref[...] += jnp.dot(a_ref[...], cur_ref[...],
                                preferred_element_type=jnp.float32)

        @pl.when(pl.program_id(1) == pl.num_programs(1) - 1)
        def _():
            out_ref[...] = acc_ref[:, :out_ch].astype(out_ref.dtype)
            if has_next:
                next_ref[...] = acc_ref[:, out_ch:].astype(next_ref.dtype)

    return kernel


def _propagate_step(adj, cur, out_prev, *, hop, out_ch, tm, tk, cdt):
    m = adj.shape[0]
    w_rem = cur.shape[1]               # (hops - hop + 1) * out_ch
    w_next = w_rem - out_ch
    has_next = w_next > 0
    cb = jnp.dtype(cdt).itemsize
    assert m % tm == 0 and m % tk == 0

    # Shrink tiles if the double-buffered footprint would exceed the VMEM budget
    # (matters on v7x with 64 MiB physical VMEM and very wide channel counts).
    def vmem_est(tm_, tk_):
        return (2 * tm_ * tk_ * cb + 2 * tk_ * w_rem * cb + tm_ * w_rem * 4
                + 2 * tm_ * out_ch * 4 + 2 * tm_ * w_next * cb)

    budget = int(0.8 * _VMEM_LIMIT)
    while vmem_est(tm, tk) > budget and tk > 128:
        tk //= 2
    while vmem_est(tm, tk) > budget and tm > 128:
        tm //= 2

    out_shapes = [jax.ShapeDtypeStruct(out_prev.shape, out_prev.dtype)]
    out_specs = [pl.BlockSpec((tm, out_ch), lambda i, k, h=hop: (i, h))]
    if has_next:
        out_shapes.append(jax.ShapeDtypeStruct((m, w_next), cdt))
        out_specs.append(pl.BlockSpec((tm, w_next), lambda i, k: (i, 0)))

    a_bytes = jnp.dtype(adj.dtype).itemsize
    cost = pl.CostEstimate(
        flops=int(2 * m * m * w_rem),
        transcendentals=0,
        bytes_accessed=int(m * m * a_bytes                      # A streamed once (full-width N)
                           + (m // tm) * m * w_rem * cb         # cur re-read per row tile
                           + m * out_ch * 4
                           + m * w_next * cb),
    )
    res = pl.pallas_call(
        _make_prop_kernel(out_ch, has_next),
        out_shape=tuple(out_shapes),
        grid_spec=pltpu.PrefetchScalarGridSpec(
            num_scalar_prefetch=0,
            grid=(m // tm, m // tk),
            in_specs=[
                pl.BlockSpec((tm, tk), lambda i, k: (i, k)),
                pl.BlockSpec((tk, w_rem), lambda i, k: (k, 0)),  # full-width N tile
                pl.BlockSpec(memory_space=pl.ANY),               # aliased output buf, no DMA
            ],
            out_specs=tuple(out_specs),
            scratch_shapes=[pltpu.VMEM((tm, w_rem), jnp.float32)],
        ),
        compiler_params=pltpu.CompilerParams(
            dimension_semantics=("parallel", "arbitrary"),
            vmem_limit_bytes=_VMEM_LIMIT,
        ),
        input_output_aliases={2: 0},   # out_prev -> out (in-place column writeback)
        cost_estimate=cost,
    )(adj, cur, out_prev)
    if has_next:
        return res[0], res[1]
    return res[0], None


# --------------------------------------------------------------------------
# MixHopLayer forward
# --------------------------------------------------------------------------
def mixhop_forward(x, adj, lin_weights, lin_biases, *, compute_dtype=jnp.bfloat16):
    """out = concat([lin_0(x), A @ lin_1(x), ..., A^hops @ lin_hops(x)], axis=1).

    lin_weights[j]: [in_channels, out_channels] (pre-transposed vs. torch Linear)
    lin_biases[j]:  [out_channels]
    Inter-hop slabs are kept in `compute_dtype` (bf16 default, MXU fast path);
    pass compute_dtype=jnp.float32 for a full-precision path.  Final output
    columns are always written in f32 directly from the f32 accumulators.
    """
    hops = len(lin_weights) - 1
    n, in_ch = x.shape
    out_ch = lin_weights[0].shape[1]

    # Pad everything to lane/sublane-friendly multiples of 128 (zero padding is
    # exact: padded adjacency rows/cols are zero, padded weight cols are zero).
    n_pad = _round_up(n, 128)
    in_pad = _round_up(in_ch, 128)
    c_pad = _round_up(out_ch, 128)

    cdt = jnp.dtype(compute_dtype)
    xp = _pad_2d(x, n_pad, in_pad).astype(cdt)
    ap = _pad_2d(adj, n_pad, n_pad).astype(cdt)
    w_all = jnp.concatenate(
        [_pad_2d(w, in_pad, c_pad) for w in lin_weights], axis=1).astype(cdt)
    b_all = jnp.concatenate(
        [_pad_2d(b.reshape(1, -1), 1, c_pad) for b in lin_biases],
        axis=1).astype(jnp.float32)

    tm = _row_tile(n_pad)
    tk = _k_tile(n_pad)

    # Stage 1: fused linears; hop-0 columns land directly in the final buffer.
    out, cur = _mixhop_linear(xp, w_all, b_all, out_ch=c_pad, hops=hops,
                              tm=tm, cdt=cdt)

    # Stage 2: hop propagation; step s finishes hop s and writes it in place.
    for s in range(1, hops + 1):
        out, cur = _propagate_step(ap, cur, out, hop=s, out_ch=c_pad,
                                   tm=tm, tk=tk, cdt=cdt)

    if n_pad != n or c_pad != out_ch:
        # TODO(synk): unaligned shapes fall back to one XLA slice/concat here.
        out = jnp.concatenate(
            [out[:n, j * c_pad:j * c_pad + out_ch] for j in range(hops + 1)],
            axis=1)
    return out


# --------------------------------------------------------------------------
if __name__ == "__main__":
    # Small, lane-aligned shapes consistent with the module.
    num_nodes = 256
    in_channels = 128
    out_channels = 128
    hops = 2

    key = jax.random.PRNGKey(0)
    k_edge, k_feat, k_w = jax.random.split(key, 3)

    # Dense 0/1 adjacency built from random edges (stand-in for SparseTensor adj_t).
    n_edges = 2048
    rows = jax.random.randint(k_edge, (n_edges,), 0, num_nodes)
    cols = jax.random.randint(jax.random.fold_in(k_edge, 1), (n_edges,), 0, num_nodes)
    adj = jnp.zeros((num_nodes, num_nodes), jnp.float32).at[rows, cols].set(1.0)

    x = jax.random.normal(k_feat, (num_nodes, in_channels), jnp.float32)

    # nn.Linear-style init; weights stored [in, out] (transposed vs. PyTorch).
    bound = 1.0 / math.sqrt(in_channels)
    wkeys = jax.random.split(k_w, 2 * (hops + 1))
    weights = [jax.random.uniform(wkeys[2 * j], (in_channels, out_channels),
                                  jnp.float32, -bound, bound)
               for j in range(hops + 1)]
    biases = [jax.random.uniform(wkeys[2 * j + 1], (out_channels,),
                                 jnp.float32, -bound, bound)
              for j in range(hops + 1)]

    fwd = jax.jit(mixhop_forward)
    out = fwd(x, adj, weights, biases)
    jax.block_until_ready(out)
    assert out.shape == (num_nodes, (hops + 1) * out_channels)

    # Pure-JAX f32 reference (loose tolerance: kernel path quantizes to bf16).
    ref_parts = [x @ weights[0] + biases[0]]
    for j in range(1, hops + 1):
        xj = x @ weights[j] + biases[j]
        for _ in range(j):
            xj = adj @ xj
        ref_parts.append(xj)
    ref = jnp.concatenate(ref_parts, axis=1)
    rel_err = float(jnp.max(jnp.abs(out - ref)) / (jnp.max(jnp.abs(ref)) + 1e-6))
    assert rel_err < 5e-2, f"relative error too large: {rel_err}"

    print("KERNEL_OK")
</pallas_src>

<mosaic_0001>
module attributes {stable_mosaic.version = 11 : i64} {
  func.func @kernel(%arg0: i32, %arg1: memref<128x128xbf16, #tpu.memory_space<vmem>>, %arg2: memref<128x384xbf16, #tpu.memory_space<vmem>>, %arg3: memref<1x384xf32, #tpu.memory_space<vmem>>, %arg4: memref<128x128xf32, #tpu.memory_space<vmem>>, %arg5: memref<128x256xbf16, #tpu.memory_space<vmem>>) attributes {dimension_semantics = [#tpu.dimension_semantics<parallel>], iteration_bounds = array<i64: 2>, scalar_prefetch = 0 : i64, scratch_operands = 0 : i64, tpu.core_type = #tpu.core_type<tc>, window_params = [{transform_indices = @transform_0, window_bounds = array<i64: 128, 128>}, {pipeline_mode = #tpu.pipeline_mode<synchronous>, transform_indices = @transform_1, window_bounds = array<i64: 128, 384>}, {pipeline_mode = #tpu.pipeline_mode<synchronous>, transform_indices = @transform_2, window_bounds = array<i64: 1, 384>}, {transform_indices = @transform_3, window_bounds = array<i64: 128, 128>}, {transform_indices = @transform_4, window_bounds = array<i64: 128, 256>}]} {
    %c0 = arith.constant 0 : index
    %c0_0 = arith.constant 0 : index
    %0 = vector.load %arg1[%c0, %c0_0] : memref<128x128xbf16, #tpu.memory_space<vmem>>, vector<128x128xbf16>
    %c0_1 = arith.constant 0 : index
    %c0_2 = arith.constant 0 : index
    %1 = vector.load %arg2[%c0_1, %c0_2] : memref<128x384xbf16, #tpu.memory_space<vmem>>, vector<128x384xbf16>
    %cst = arith.constant dense<0.000000e+00> : vector<128x384xf32>
    %2 = tpu.matmul %0, %1, %cst {dimension_numbers = #tpu.dot_dimension_numbers<[1], [0], [0], [1], [0, 0, 1, 1], [], []>} : vector<128x128xbf16>, vector<128x384xbf16>, vector<128x384xf32> -> vector<128x384xf32>
    %c0_3 = arith.constant 0 : index
    %c0_4 = arith.constant 0 : index
    %3 = vector.load %arg3[%c0_3, %c0_4] : memref<1x384xf32, #tpu.memory_space<vmem>>, vector<1x384xf32>
    %4 = vector.broadcast %3 : vector<1x384xf32> to vector<128x384xf32>
    %5 = arith.addf %2, %4 : vector<128x384xf32>
    %6 = vector.extract_strided_slice %5 {offsets = [0, 0], sizes = [128, 128], strides = [1, 1]} : vector<128x384xf32> to vector<128x128xf32>
    %c0_5 = arith.constant 0 : index
    %c0_6 = arith.constant 0 : index
    %7 = vector.load %arg4[%c0_5, %c0_6] : memref<128x128xf32, #tpu.memory_space<vmem>>, vector<128x128xf32>
    tpu.vector_store %arg4[%c0_5, %c0_6], %6 {strides = array<i32>} : memref<128x128xf32, #tpu.memory_space<vmem>>, vector<128x128xf32>,
    %8 = vector.extract_strided_slice %5 {offsets = [0, 128], sizes = [128, 256], strides = [1, 1]} : vector<128x384xf32> to vector<128x256xf32>
    %9 = arith.truncf %8 : vector<128x256xf32> to vector<128x256xbf16>
    %c0_7 = arith.constant 0 : index
    %c0_8 = arith.constant 0 : index
    %10 = vector.load %arg5[%c0_7, %c0_8] : memref<128x256xbf16, #tpu.memory_space<vmem>>, vector<128x256xbf16>
    tpu.vector_store %arg5[%c0_7, %c0_8], %9 {strides = array<i32>} : memref<128x256xbf16, #tpu.memory_space<vmem>>, vector<128x256xbf16>,
    return
  }
  func.func @transform_0(%arg0: i32) -> (i32, i32) {
    %c0_i32 = arith.constant 0 : i32
    %c0_i32_0 = arith.constant 0 : i32
    return %arg0, %c0_i32 : i32, i32
  }
  func.func @transform_1(%arg0: i32) -> (i32, i32) {
    %c0_i32 = arith.constant 0 : i32
    %c0_i32_0 = arith.constant 0 : i32
    %c0_i32_1 = arith.constant 0 : i32
    return %c0_i32, %c0_i32_0 : i32, i32
  }
  func.func @transform_2(%arg0: i32) -> (i32, i32) {
    %c0_i32 = arith.constant 0 : i32
    %c0_i32_0 = arith.constant 0 : i32
    %c0_i32_1 = arith.constant 0 : i32
    return %c0_i32, %c0_i32_0 : i32, i32
  }
  func.func @transform_3(%arg0: i32) -> (i32, i32) {
    %c0_i32 = arith.constant 0 : i32
    %c0_i32_0 = arith.constant 0 : i32
    return %arg0, %c0_i32 : i32, i32
  }
  func.func @transform_4(%arg0: i32) -> (i32, i32) {
    %c0_i32 = arith.constant 0 : i32
    %c0_i32_0 = arith.constant 0 : i32
    return %arg0, %c0_i32 : i32, i32
  }
}

module attributes {stable_mosaic.version = 11 : i64} {
  func.func @kernel(%arg0: i32, %arg1: i32, %arg2: memref<128x256xbf16, #tpu.memory_space<vmem>>, %arg3: memref<256x128xbf16, #tpu.memory_space<vmem>>, %arg4: memref<256x384xf32, #tpu.memory_space<any>>, %arg5: memref<128x128xf32, #tpu.memory_space<vmem>>, %arg6: memref<128x128xf32, #tpu.memory_space<vmem>>) attributes {dimension_semantics = [#tpu.dimension_semantics<parallel>, #tpu.dimension_semantics<arbitrary>], iteration_bounds = array<i64: 2, 1>, scalar_prefetch = 0 : i64, scratch_operands = 1 : i64, tpu.core_type = #tpu.core_type<tc>, window_params = [{transform_indices = @transform_0, window_bounds = array<i64: 128, 256>}, {transform_indices = @transform_1, window_bounds = array<i64: 256, 128>}, {}, {transform_indices = @transform_3, window_bounds = array<i64: 128, 128>}]} {
    %c0_i32 = arith.constant 0 : i32
    %0 = arith.cmpi eq, %arg1, %c0_i32 : i32
    %1 = arith.extui %0 : i1 to i32
    %c0_i32_0 = arith.constant 0 : i32
    %2 = arith.cmpi ne, %1, %c0_i32_0 : i32
    scf.if %2 {
      %cst_10 = arith.constant 0.000000e+00 : f32
      %12 = vector.broadcast %cst_10 : f32 to vector<128x128xf32>
      %c0_11 = arith.constant 0 : index
      %c0_12 = arith.constant 0 : index
      %13 = vector.load %arg6[%c0_11, %c0_12] : memref<128x128xf32, #tpu.memory_space<vmem>>, vector<128x128xf32>
      tpu.vector_store %arg6[%c0_11, %c0_12], %12 {strides = array<i32>} : memref<128x128xf32, #tpu.memory_space<vmem>>, vector<128x128xf32>,
    } else {
    }
    %c0 = arith.constant 0 : index
    %c0_1 = arith.constant 0 : index
    %3 = vector.load %arg6[%c0, %c0_1] : memref<128x128xf32, #tpu.memory_space<vmem>>, vector<128x128xf32>
    %c0_2 = arith.constant 0 : index
    %c0_3 = arith.constant 0 : index
    %4 = vector.load %arg2[%c0_2, %c0_3] : memref<128x256xbf16, #tpu.memory_space<vmem>>, vector<128x256xbf16>
    %c0_4 = arith.constant 0 : index
    %c0_5 = arith.constant 0 : index
    %5 = vector.load %arg3[%c0_4, %c0_5] : memref<256x128xbf16, #tpu.memory_space<vmem>>, vector<256x128xbf16>
    %cst = arith.constant dense<0.000000e+00> : vector<128x128xf32>
    %6 = tpu.matmul %4, %5, %cst {dimension_numbers = #tpu.dot_dimension_numbers<[1], [0], [0], [1], [0, 0, 1, 1], [], []>} : vector<128x256xbf16>, vector<256x128xbf16>, vector<128x128xf32> -> vector<128x128xf32>
    %7 = arith.addf %3, %6 : vector<128x128xf32>
    %c0_6 = arith.constant 0 : index
    %c0_7 = arith.constant 0 : index
    %8 = vector.load %arg6[%c0_6, %c0_7] : memref<128x128xf32, #tpu.memory_space<vmem>>, vector<128x128xf32>
    tpu.vector_store %arg6[%c0_6, %c0_7], %7 {strides = array<i32>} : memref<128x128xf32, #tpu.memory_space<vmem>>, vector<128x128xf32>,
    %c0_i32_8 = arith.constant 0 : i32
    %9 = arith.cmpi eq, %arg1, %c0_i32_8 : i32
    %10 = arith.extui %9 : i1 to i32
    %c0_i32_9 = arith.constant 0 : i32
    %11 = arith.cmpi ne, %10, %c0_i32_9 : i32
    scf.if %11 {
      %c0_10 = arith.constant 0 : index
      %c0_11 = arith.constant 0 : index
      %12 = vector.load %arg6[%c0_10, %c0_11] : memref<128x128xf32, #tpu.memory_space<vmem>>, vector<128x128xf32>
      %c0_12 = arith.constant 0 : index
      %c0_13 = arith.constant 0 : index
      %13 = vector.load %arg5[%c0_12, %c0_13] : memref<128x128xf32, #tpu.memory_space<vmem>>, vector<128x128xf32>
      tpu.vector_store %arg5[%c0_12, %c0_13], %12 {strides = array<i32>} : memref<128x128xf32, #tpu.memory_space<vmem>>, vector<128x128xf32>,
    } else {
    }
    return
  }
  func.func @transform_0(%arg0: i32, %arg1: i32) -> (i32, i32) {
    %c0_i32 = arith.constant 0 : i32
    return %arg0, %arg1 : i32, i32
  }
  func.func @transform_1(%arg0: i32, %arg1: i32) -> (i32, i32) {
    %c0_i32 = arith.constant 0 : i32
    %c0_i32_0 = arith.constant 0 : i32
    return %arg1, %c0_i32 : i32, i32
  }
  func.func @transform_3(%arg0: i32, %arg1: i32) -> (i32, i32) {
    %c2_i32 = arith.constant 2 : i32
    %c0_i32 = arith.constant 0 : i32
    return %arg0, %c2_i32 : i32, i32
  }
}

module attributes {stable_mosaic.version = 11 : i64} {
  func.func @kernel(%arg0: i32, %arg1: i32, %arg2: memref<128x256xbf16, #tpu.memory_space<vmem>>, %arg3: memref<256x256xbf16, #tpu.memory_space<vmem>>, %arg4: memref<256x384xf32, #tpu.memory_space<any>>, %arg5: memref<128x128xf32, #tpu.memory_space<vmem>>, %arg6: memref<128x128xbf16, #tpu.memory_space<vmem>>, %arg7: memref<128x256xf32, #tpu.memory_space<vmem>>) attributes {dimension_semantics = [#tpu.dimension_semantics<parallel>, #tpu.dimension_semantics<arbitrary>], iteration_bounds = array<i64: 2, 1>, scalar_prefetch = 0 : i64, scratch_operands = 1 : i64, tpu.core_type = #tpu.core_type<tc>, window_params = [{transform_indices = @transform_0, window_bounds = array<i64: 128, 256>}, {transform_indices = @transform_1, window_bounds = array<i64: 256, 256>}, {}, {transform_indices = @transform_3, window_bounds = array<i64: 128, 128>}, {transform_indices = @transform_4, window_bounds = array<i64: 128, 128>}]} {
    %c0_i32 = arith.constant 0 : i32
    %0 = arith.cmpi eq, %arg1, %c0_i32 : i32
    %1 = arith.extui %0 : i1 to i32
    %c0_i32_0 = arith.constant 0 : i32
    %2 = arith.cmpi ne, %1, %c0_i32_0 : i32
    scf.if %2 {
      %cst_10 = arith.constant 0.000000e+00 : f32
      %12 = vector.broadcast %cst_10 : f32 to vector<128x256xf32>
      %c0_11 = arith.constant 0 : index
      %c0_12 = arith.constant 0 : index
      %13 = vector.load %arg7[%c0_11, %c0_12] : memref<128x256xf32, #tpu.memory_space<vmem>>, vector<128x256xf32>
      tpu.vector_store %arg7[%c0_11, %c0_12], %12 {strides = array<i32>} : memref<128x256xf32, #tpu.memory_space<vmem>>, vector<128x256xf32>,
    } else {
    }
    %c0 = arith.constant 0 : index
    %c0_1 = arith.constant 0 : index
    %3 = vector.load %arg7[%c0, %c0_1] : memref<128x256xf32, #tpu.memory_space<vmem>>, vector<128x256xf32>
    %c0_2 = arith.constant 0 : index
    %c0_3 = arith.constant 0 : index
    %4 = vector.load %arg2[%c0_2, %c0_3] : memref<128x256xbf16, #tpu.memory_space<vmem>>, vector<128x256xbf16>
    %c0_4 = arith.constant 0 : index
    %c0_5 = arith.constant 0 : index
    %5 = vector.load %arg3[%c0_4, %c0_5] : memref<256x256xbf16, #tpu.memory_space<vmem>>, vector<256x256xbf16>
    %cst = arith.constant dense<0.000000e+00> : vector<128x256xf32>
    %6 = tpu.matmul %4, %5, %cst {dimension_numbers = #tpu.dot_dimension_numbers<[1], [0], [0], [1], [0, 0, 1, 1], [], []>} : vector<128x256xbf16>, vector<256x256xbf16>, vector<128x256xf32> -> vector<128x256xf32>
    %7 = arith.addf %3, %6 : vector<128x256xf32>
    %c0_6 = arith.constant 0 : index
    %c0_7 = arith.constant 0 : index
    %8 = vector.load %arg7[%c0_6, %c0_7] : memref<128x256xf32, #tpu.memory_space<vmem>>, vector<128x256xf32>
    tpu.vector_store %arg7[%c0_6, %c0_7], %7 {strides = array<i32>} : memref<128x256xf32, #tpu.memory_space<vmem>>, vector<128x256xf32>,
    %c0_i32_8 = arith.constant 0 : i32
    %9 = arith.cmpi eq, %arg1, %c0_i32_8 : i32
    %10 = arith.extui %9 : i1 to i32
    %c0_i32_9 = arith.constant 0 : i32
    %11 = arith.cmpi ne, %10, %c0_i32_9 : i32
    scf.if %11 {
      %c0_10 = arith.constant 0 : index
      %c0_11 = arith.constant 0 : index
      %12 = vector.load %arg7[%c0_10, %c0_11] : memref<128x256xf32, #tpu.memory_space<vmem>>, vector<128x128xf32>
      %c0_12 = arith.constant 0 : index
      %c0_13 = arith.constant 0 : index
      %13 = vector.load %arg5[%c0_12, %c0_13] : memref<128x128xf32, #tpu.memory_space<vmem>>, vector<128x128xf32>
      tpu.vector_store %arg5[%c0_12, %c0_13], %12 {strides = array<i32>} : memref<128x128xf32, #tpu.memory_space<vmem>>, vector<128x128xf32>,
      %c0_14 = arith.constant 0 : index
      %c128 = arith.constant 128 : index
      %14 = vector.load %arg7[%c0_14, %c128] : memref<128x256xf32, #tpu.memory_space<vmem>>, vector<128x128xf32>
      %15 = arith.truncf %14 : vector<128x128xf32> to vector<128x128xbf16>
      %c0_15 = arith.constant 0 : index
      %c0_16 = arith.constant 0 : index
      %16 = vector.load %arg6[%c0_15, %c0_16] : memref<128x128xbf16, #tpu.memory_space<vmem>>, vector<128x128xbf16>
      tpu.vector_store %arg6[%c0_15, %c0_16], %15 {strides = array<i32>} : memref<128x128xbf16, #tpu.memory_space<vmem>>, vector<128x128xbf16>,
    } else {
    }
    return
  }
  func.func @transform_0(%arg0: i32, %arg1: i32) -> (i32, i32) {
    %c0_i32 = arith.constant 0 : i32
    return %arg0, %arg1 : i32, i32
  }
  func.func @transform_1(%arg0: i32, %arg1: i32) -> (i32, i32) {
    %c0_i32 = arith.constant 0 : i32
    %c0_i32_0 = arith.constant 0 : i32
    return %arg1, %c0_i32 : i32, i32
  }
  func.func @transform_3(%arg0: i32, %arg1: i32) -> (i32, i32) {
    %c1_i32 = arith.constant 1 : i32
    %c0_i32 = arith.constant 0 : i32
    return %arg0, %c1_i32 : i32, i32
  }
  func.func @transform_4(%arg0: i32, %arg1: i32) -> (i32, i32) {
    %c0_i32 = arith.constant 0 : i32
    %c0_i32_0 = arith.constant 0 : i32
    return %arg0, %c0_i32 : i32, i32
  }
}

</mosaic_0001>

<llo_original>
// kernel: mixhop_forward.5
$region0: #{mixhop_forward.5}
  #allocation0 [shape = 'u32[]', space=smem, size = 0x4, offset = 0x4, fixed_abs, tag = 'smem constant byte address 0x4 - core index']
  #allocation1 [shape = 'u32[72,128]{1,0:T(1,128)}', space=vmem, size = 0x9000, scoped, tag = 'internal scratch']
  #allocation2 [shape = 'f32[128,128]{1,0:T(8,128)}', space=vmem, size = 0x10000, scoped, tag = 'scratch operand']
  %s0 = inlined_call_operand.vmem [shape: bf16[256,256], index: 0, kind: input, shape index: {}]
  %s1 = inlined_call_operand.vmem [shape: bf16[256,128], index: 1, kind: input, shape index: {}]
  %s2 = inlined_call_operand.hbm [shape: f32[256,384], index: 2, kind: input, shape index: {}, may-alias: {2,3}]
  %s3 = inlined_call_operand.hbm [shape: f32[256,384], index: 3, kind: output, shape index: {}, may-alias: {2,3}]
  %s4 = sld [smem:[#allocation0]]
  $region49: #{mixhop_forward.5} parent=0
    _
  %s6 = ssub.s32 1, %s4
  %s7 = scalar_select 0, %s6, %s4
  $region1: #{mixhop_forward.5} parent=0
    #allocation3 [shape = 'u8[131072]{0}', space=vmem, size = 0x20000, scoped, tag = 'output window, operand 0']
    #allocation4 [shape = 's32[2]{0}', space=sflag, size = 0x8, scoped, tag = 'scoped memory for mixhop_forward.5']
    %8 = vsyncpa [#allocation4], 0
    %s9 = scalar_lea.sflag [#allocation4], 1
    %10 = vsyncpa %s9, 0
    loop: start=0, step=1, limit=4
    $region2: #{mixhop_forward.5} parent=1 // loop_pre_header
      _
    $region3: #{mixhop_forward.5} parent=1 // loop_header
      %s12 = sphi 0, %s16
      %p13 = scmp.ge.s32.totalorder %s12, 4
      %s19 = sphi 0, %s31
      %s20 = sphi 0, %s27
      %s21 = sphi 0, %s19
      %s22 = sphi 0, %s20
      %s23 = sphi 0, %s21
      %s24 = sphi 0, %s22
      %s36 = sphi 0, %s38
      %s39 = sphi 0, %s36
      %s40 = sphi 0, %s39
      %s56 = sphi 0, %s40
      %s62 = sphi 0, %s64
      %s65 = sphi 0, %s62
      %s66 = sphi 0, %s65
      %s82 = sphi 0, %s66
      %s88 = sphi 0, %s90
      %s91 = sphi 0, %s88
      %s92 = sphi 0, %s91
      %s108 = sphi 0, %s92
    $region4: #{mixhop_forward.5} parent=1 // loop_header_branch
      %15 = sbr.rel (%p13) target = $region8
    $region5: #{mixhop_forward.5} parent=1 // loop_body
      %s17 = ssub.s32 %s12, 1
      %s18 = ssub.s32 %s12, 2
      %s25 = sadd.s32 1, %s20
      %p26 = scmp.ge.s32.totalorder %s25, 1
      %s27 = scalar_select %p26, 0, %s25
      %s28 = sadd.s32 1, %s19
      %s29 = scalar_select %p26, %s28, %s19
      %p30 = scmp.ge.s32.totalorder %s29, 2
      %s31 = scalar_select %p30, 0, %s29
      %s32 = ssub.s32 %s19, %s31
      %s33 = ssub.s32 %s20, %s27
      %s34 = sor.u32 %s32, %s33
      %p35 = scmp.eq.s32.totalorder %s34, 0
      %s37 = sadd.s32 %s36, 1
      %s38 = scalar_select %p35, %s36, %s37
      %p41 = pneg %p35
      %p42 = scmp.eq.s32.totalorder %s12, 1
      %p43 = por %p41, %p42
      %p44 = scmp.ne.s32.totalorder %s36, %s39
      %p45 = scmp.eq.s32.totalorder %s12, 0
      %p46 = por %p44, %p45
      %p47 = scmp.ne.s32.totalorder %s36, %s39
      %p48 = scmp.eq.s32.totalorder %s17, 1
      %p49 = por %p47, %p48
      %p50 = scmp.ne.s32.totalorder %s39, %s40
      %p51 = scmp.eq.s32.totalorder %s17, 0
      %p52 = por %p50, %p51
      %p53 = scmp.ne.s32.totalorder %s39, %s40
      %p54 = scmp.eq.s32.totalorder %s18, 1
      %p55 = por %p53, %p54
      %p57 = scmp.ne.s32.totalorder %s40, %s56
      %p58 = scmp.eq.s32.totalorder %s18, 0
      %p59 = por %p57, %p58
      %s60 = ssub.s32 %s20, %s27
      %p61 = scmp.eq.s32.totalorder %s60, 0
      %s63 = sadd.s32 %s62, 1
      %s64 = scalar_select %p61, %s62, %s63
      %p67 = pneg %p61
      %p68 = scmp.eq.s32.totalorder %s12, 1
      %p69 = por %p67, %p68
      %p70 = scmp.ne.s32.totalorder %s62, %s65
      %p71 = scmp.eq.s32.totalorder %s12, 0
      %p72 = por %p70, %p71
      %p73 = scmp.ne.s32.totalorder %s62, %s65
      %p74 = scmp.eq.s32.totalorder %s17, 1
      %p75 = por %p73, %p74
      %p76 = scmp.ne.s32.totalorder %s65, %s66
      %p77 = scmp.eq.s32.totalorder %s17, 0
      %p78 = por %p76, %p77
      %p79 = scmp.ne.s32.totalorder %s65, %s66
      %p80 = scmp.eq.s32.totalorder %s18, 1
      %p81 = por %p79, %p80
      %p83 = scmp.ne.s32.totalorder %s66, %s82
      %p84 = scmp.eq.s32.totalorder %s18, 0
      %p85 = por %p83, %p84
      %s86 = ssub.s32 %s19, %s31
      %p87 = scmp.eq.s32.totalorder %s86, 0
      %s89 = sadd.s32 %s88, 1
      %s90 = scalar_select %p87, %s88, %s89
      %p93 = pneg %p87
      %p94 = scmp.eq.s32.totalorder %s12, 1
      %p95 = por %p93, %p94
      %p96 = scmp.ne.s32.totalorder %s88, %s91
      %p97 = scmp.eq.s32.totalorder %s12, 0
      %p98 = por %p96, %p97
      %p99 = scmp.ne.s32.totalorder %s88, %s91
      %p100 = scmp.eq.s32.totalorder %s17, 1
      %p101 = por %p99, %p100
      %p102 = scmp.ne.s32.totalorder %s91, %s92
      %p103 = scmp.eq.s32.totalorder %s17, 0
      %p104 = por %p102, %p103
      %p105 = scmp.ne.s32.totalorder %s91, %s92
      %p106 = scmp.eq.s32.totalorder %s18, 1
      %p107 = por %p105, %p106
      %p109 = scmp.ne.s32.totalorder %s92, %s108
      %p110 = scmp.eq.s32.totalorder %s18, 0
      %p111 = por %p109, %p110
      %p112 = scmp.le.s32.totalorder 1, %s12
      %p113 = scmp.lt.s32.totalorder %s12, 3
      %p114 = pnand %p112, %p113
      %p115 = pneg %p114
      // Predicated region
      $region9: #{mixhop_forward.5} parent=5 // pred_check
        _
      $region10: #{mixhop_forward.5} parent=5 // pred_check_branch
        %117 = sbr.rel (%p114) target = $region12
      $region11: #{mixhop_forward.5} parent=5 // pred_region
        %s118 = ssub.s32 %s12, 1
        // Predicated region
        $region13: #{mixhop_forward.5} parent=11 // pred_check
          %p119 = pneg %p78
        $region14: #{mixhop_forward.5} parent=11 // pred_check_branch
          %121 = sbr.rel (%p119) target = $region16
        $region15: #{mixhop_forward.5} parent=11 // pred_region
          %s122 = smul.u32 32, %s22
          %p123 = scmp.lt.s32.totalorder %s122, 31
          %s124 = scalar_select %p123, %s122, 31
          %s125 = smul.addr %s124, 4
          %s126 = scalar_lea.vmem %s1, %s125
          %s127 = smul.u32 32, %s22
        $region16: #{mixhop_forward.5} parent=11 // pred_fallthru
          _
      $region12: #{mixhop_forward.5} parent=5 // pred_fallthru
        _
      %p128 = scmp.lt.s32.totalorder %s12, 2
      // Predicated region
      $region17: #{mixhop_forward.5} parent=5 // pred_check
        %p129 = pneg %p128
      $region18: #{mixhop_forward.5} parent=5 // pred_check_branch
        %131 = sbr.rel (%p129) target = $region20
      $region19: #{mixhop_forward.5} parent=5 // pred_region
        // Predicated region
        $region21: #{mixhop_forward.5} parent=19 // pred_check
          %p132 = pneg %p46
        $region22: #{mixhop_forward.5} parent=19 // pred_check_branch
          %134 = sbr.rel (%p132) target = $region24
        $region23: #{mixhop_forward.5} parent=19 // pred_region
          %s135 = smul.u32 16, %s19
          %s136 = smul.u32 2, %s20
          %p137 = scmp.lt.s32.totalorder %s135, 31
          %s138 = scalar_select %p137, %s135, 31
          %p139 = scmp.lt.s32.totalorder %s136, 1
          %s140 = scalar_select %p139, %s136, 1
          %s141 = smul.addr %s138, 2
          %s142 = sadd.s32 %s140, %s141
          %s143 = smul.addr %s142, 4
          %s144 = scalar_lea.vmem %s0, %s143
          %s145 = smul.u32 16, %s19
          %s146 = smul.u32 2, %s20
        $region24: #{mixhop_forward.5} parent=19 // pred_fallthru
          _
      $region20: #{mixhop_forward.5} parent=5 // pred_fallthru
        _
      %p147 = scmp.le.s32.totalorder 1, %s12
      %p148 = scmp.lt.s32.totalorder %s12, 3
      %p149 = pnand %p147, %p148
      %p150 = pneg %p149
      // Predicated region
      $region25: #{mixhop_forward.5} parent=5 // pred_check
        _
      $region26: #{mixhop_forward.5} parent=5 // pred_check_branch
        %152 = sbr.rel (%p149) target = $region28
      $region27: #{mixhop_forward.5} parent=5 // pred_region
        %s153 = ssub.s32 %s12, 1
        %s154 = smul.u32 16, %s21
        %s155 = smul.u32 2, %s22
        %p156 = scmp.lt.s32.totalorder %s154, 31
        %s157 = scalar_select %p156, %s154, 31
        %p158 = scmp.lt.s32.totalorder %s155, 1
        %s159 = scalar_select %p158, %s155, 1
        %s160 = smul.addr %s157, 2
        %s161 = sadd.s32 %s159, %s160
        %s162 = smul.addr %s161, 4
        %s163 = scalar_lea.vmem %s0, %s162
        %p164 = pneg %p52
        %p165 = pneg %p49
        %s166 = smul.u32 32, %s22
        %p167 = scmp.lt.s32.totalorder %s166, 31
        %s168 = scalar_select %p167, %s166, 31
        %s169 = smul.addr %s168, 4
        %s170 = scalar_lea.vmem %s1, %s169
        %p171 = pneg %p78
        %p172 = pneg %p75
        %p173 = pneg %p104
        %p174 = pneg %p101
        %s175 = sand.u32 %s91, 1
        %s176 = scalar_lea.sflag [#allocation4], %s175
        %s177 = sand.u32 %s91, 1
        %s178 = smul.addr %s177, 128
        %s179 = scalar_lea.vmem [#allocation3], %s178
        %s180 = smul.u32 16, %s21
        %s181 = smul.u32 2, %s22
        %p182 = scmp.lt.s32.totalorder %s180, 31
        %s183 = scalar_select %p182, %s180, 31
        %p184 = scmp.lt.s32.totalorder %s181, 1
        %s185 = scalar_select %p184, %s181, 1
        %s186 = smul.addr %s183, 2
        %s187 = sadd.s32 %s185, %s186
        %s188 = smul.addr %s187, 4
        %s189 = scalar_lea.vmem %s0, %s188
        %s190 = smul.u32 16, %s21
        %s191 = smul.u32 2, %s22
        %s192 = smul.u32 32, %s22
        %p193 = scmp.lt.s32.totalorder %s192, 31
        %s194 = scalar_select %p193, %s192, 31
        %s195 = smul.addr %s194, 4
        %s196 = scalar_lea.vmem %s1, %s195
        %s197 = smul.u32 32, %s22
        %s198 = smul.u32 16, %s21
        %p199 = scmp.eq.s32.totalorder %s22, 0
        // Predicated region
        $region29: #{mixhop_forward.5} parent=27 // pred_check
          %p200 = pneg %p199
        $region30: #{mixhop_forward.5} parent=27 // pred_check_branch
          %202 = sbr.rel (%p200) target = $region32
        $region31: #{mixhop_forward.5} parent=27 // pred_region
          %203 = vst [vmem:[#allocation2] sm:$0xff] 0.0
          %204 = vst [vmem:[#allocation2 + $0x8] sm:$0xff] 0.0
          %205 = vst [vmem:[#allocation2 + $0x10] sm:$0xff] 0.0
          %206 = vst [vmem:[#allocation2 + $0x18] sm:$0xff] 0.0
          %207 = vst [vmem:[#allocation2 + $0x20] sm:$0xff] 0.0
          %208 = vst [vmem:[#allocation2 + $0x28] sm:$0xff] 0.0
          %209 = vst [vmem:[#allocation2 + $0x30] sm:$0xff] 0.0
          %210 = vst [vmem:[#allocation2 + $0x38] sm:$0xff] 0.0
          %211 = vst [vmem:[#allocation2 + $0x40] sm:$0xff] 0.0
          %212 = vst [vmem:[#allocation2 + $0x48] sm:$0xff] 0.0
          %213 = vst [vmem:[#allocation2 + $0x50] sm:$0xff] 0.0
          %214 = vst [vmem:[#allocation2 + $0x58] sm:$0xff] 0.0
          %215 = vst [vmem:[#allocation2 + $0x60] sm:$0xff] 0.0
          %216 = vst [vmem:[#allocation2 + $0x68] sm:$0xff] 0.0
          %217 = vst [vmem:[#allocation2 + $0x70] sm:$0xff] 0.0
          %218 = vst [vmem:[#allocation2 + $0x78] sm:$0xff] 0.0
        $region32: #{mixhop_forward.5} parent=27 // pred_fallthru
          _
        %v219 = vld [vmem:[#allocation2] sm:$0xff]
        %v220 = vld [vmem:[#allocation2 + $0x8] sm:$0xff]
        %v221 = vld [vmem:[#allocation2 + $0x10] sm:$0xff]
        %v222 = vld [vmem:[#allocation2 + $0x18] sm:$0xff]
        %v223 = vld [vmem:[#allocation2 + $0x20] sm:$0xff]
        %v224 = vld [vmem:[#allocation2 + $0x28] sm:$0xff]
        %v225 = vld [vmem:[#allocation2 + $0x30] sm:$0xff]
        %v226 = vld [vmem:[#allocation2 + $0x38] sm:$0xff]
        %v227 = vld [vmem:[#allocation2 + $0x40] sm:$0xff]
        %v228 = vld [vmem:[#allocation2 + $0x48] sm:$0xff]
        %v229 = vld [vmem:[#allocation2 + $0x50] sm:$0xff]
        %v230 = vld [vmem:[#allocation2 + $0x58] sm:$0xff]
        %v231 = vld [vmem:[#allocation2 + $0x60] sm:$0xff]
        %v232 = vld [vmem:[#allocation2 + $0x68] sm:$0xff]
        %v233 = vld [vmem:[#allocation2 + $0x70] sm:$0xff]
        %v234 = vld [vmem:[#allocation2 + $0x78] sm:$0xff]
        %v235 = vld [vmem:[%s189] sm:$0xff]
        %v236 = vld [vmem:[%s189 + $0x8] sm:$0xff]
        %v237 = vld [vmem:[%s189 + $0x10] sm:$0xff]
        %v238 = vld [vmem:[%s189 + $0x18] sm:$0xff]
        %v239 = vld [vmem:[%s189 + $0x20] sm:$0xff]
        %v240 = vld [vmem:[%s189 + $0x28] sm:$0xff]
        %v241 = vld [vmem:[%s189 + $0x30] sm:$0xff]
        %v242 = vld [vmem:[%s189 + $0x38] sm:$0xff]
        %v243 = vld [vmem:[%s189 + $0x40] sm:$0xff]
        %v244 = vld [vmem:[%s189 + $0x48] sm:$0xff]
        %v245 = vld [vmem:[%s189 + $0x50] sm:$0xff]
        %v246 = vld [vmem:[%s189 + $0x58] sm:$0xff]
        %v247 = vld [vmem:[%s189 + $0x60] sm:$0xff]
        %v248 = vld [vmem:[%s189 + $0x68] sm:$0xff]
        %v249 = vld [vmem:[%s189 + $0x70] sm:$0xff]
        %v250 = vld [vmem:[%s189 + $0x78] sm:$0xff]
        %v251 = vld [vmem:[%s196] sm:$0xf]
        %v252 = vld [vmem:[%s196 + $0x4] sm:$0xf]
        %v253 = vld [vmem:[%s196 + $0x8] sm:$0xf]
        %v254 = vld [vmem:[%s196 + $0xc] sm:$0xf]
        %v255 = vld [vmem:[%s196 + $0x10] sm:$0xf]
        %v256 = vld [vmem:[%s196 + $0x14] sm:$0xf]
        %v257 = vld [vmem:[%s196 + $0x18] sm:$0xf]
        %v258 = vld [vmem:[%s196 + $0x1c] sm:$0xf]
        %v259 = vld [vmem:[%s196 + $0x20] sm:$0xf]
        %v260 = vld [vmem:[%s196 + $0x24] sm:$0xf]
        %v261 = vld [vmem:[%s196 + $0x28] sm:$0xf]
        %v262 = vld [vmem:[%s196 + $0x2c] sm:$0xf]
        %v263 = vld [vmem:[%s196 + $0x30] sm:$0xf]
        %v264 = vld [vmem:[%s196 + $0x34] sm:$0xf]
        %v265 = vld [vmem:[%s196 + $0x38] sm:$0xf]
        %v266 = vld [vmem:[%s196 + $0x3c] sm:$0xf]
        %v267 = vld [vmem:[%s196 + $0x40] sm:$0xf]
        %v268 = vld [vmem:[%s196 + $0x44] sm:$0xf]
        %v269 = vld [vmem:[%s196 + $0x48] sm:$0xf]
        %v270 = vld [vmem:[%s196 + $0x4c] sm:$0xf]
        %v271 = vld [vmem:[%s196 + $0x50] sm:$0xf]
        %v272 = vld [vmem:[%s196 + $0x54] sm:$0xf]
        %v273 = vld [vmem:[%s196 + $0x58] sm:$0xf]
        %v274 = vld [vmem:[%s196 + $0x5c] sm:$0xf]
        %v275 = vld [vmem:[%s196 + $0x60] sm:$0xf]
        %v276 = vld [vmem:[%s196 + $0x64] sm:$0xf]
        %v277 = vld [vmem:[%s196 + $0x68] sm:$0xf]
        %v278 = vld [vmem:[%s196 + $0x6c] sm:$0xf]
        %v279 = vld [vmem:[%s196 + $0x70] sm:$0xf]
        %v280 = vld [vmem:[%s196 + $0x74] sm:$0xf]
        %v281 = vld [vmem:[%s196 + $0x78] sm:$0xf]
        %v282 = vld [vmem:[%s196 + $0x7c] sm:$0xf]
        %v299 = vunpack.c.l.b16 %v235
        %v300 = vunpack.c.h.b16 %v235
        %v301 = vunpack.c.l.b16 %v236
        %v302 = vunpack.c.h.b16 %v236
        %v303 = vunpack.c.l.b16 %v237
        %v304 = vunpack.c.h.b16 %v237
        %v305 = vunpack.c.l.b16 %v238
        %v306 = vunpack.c.h.b16 %v238
        %v307 = vunpack.c.l.b16 %v239
        %v308 = vunpack.c.h.b16 %v239
        %v309 = vunpack.c.l.b16 %v240
        %v310 = vunpack.c.h.b16 %v240
        %v311 = vunpack.c.l.b16 %v241
        %v312 = vunpack.c.h.b16 %v241
        %v313 = vunpack.c.l.b16 %v242
        %v314 = vunpack.c.h.b16 %v242
        %v315 = vunpack.c.l.b16 %v243
        %v316 = vunpack.c.h.b16 %v243
        %v317 = vunpack.c.l.b16 %v244
        %v318 = vunpack.c.h.b16 %v244
        %v319 = vunpack.c.l.b16 %v245
        %v320 = vunpack.c.h.b16 %v245
        %v321 = vunpack.c.l.b16 %v246
        %v322 = vunpack.c.h.b16 %v246
        %v323 = vunpack.c.l.b16 %v247
        %v324 = vunpack.c.h.b16 %v247
        %v325 = vunpack.c.l.b16 %v248
        %v326 = vunpack.c.h.b16 %v248
        %v327 = vunpack.c.l.b16 %v249
        %v328 = vunpack.c.h.b16 %v249
        %v329 = vunpack.c.l.b16 %v250
        %v330 = vunpack.c.h.b16 %v250
        %v331 = vpack.c.b16 %v301, %v299
        %v332 = vpack.c.b16 %v302, %v300
        %v333 = vpack.c.b16 %v305, %v303
        %v334 = vpack.c.b16 %v306, %v304
        %v335 = vpack.c.b16 %v309, %v307
        %v336 = vpack.c.b16 %v310, %v308
        %v337 = vpack.c.b16 %v313, %v311
        %v338 = vpack.c.b16 %v314, %v312
        %v339 = vpack.c.b16 %v317, %v315
        %v340 = vpack.c.b16 %v318, %v316
        %v341 = vpack.c.b16 %v321, %v319
        %v342 = vpack.c.b16 %v322, %v320
        %v343 = vpack.c.b16 %v325, %v323
        %v344 = vpack.c.b16 %v326, %v324
        %v345 = vpack.c.b16 %v329, %v327
        %v346 = vpack.c.b16 %v330, %v328
        %v395 = vunpack.c.l.b16 %v251
        %v396 = vunpack.c.l.b16 %v252
        %v397 = vunpack.c.l.b16 %v253
        %v398 = vunpack.c.l.b16 %v254
        %v399 = vunpack.c.l.b16 %v255
        %v400 = vunpack.c.l.b16 %v256
        %v401 = vunpack.c.l.b16 %v257
        %v402 = vunpack.c.l.b16 %v258
        %v403 = vunpack.c.l.b16 %v259
        %v404 = vunpack.c.l.b16 %v260
        %v405 = vunpack.c.l.b16 %v261
        %v406 = vunpack.c.l.b16 %v262
        %v407 = vunpack.c.l.b16 %v263
        %v408 = vunpack.c.l.b16 %v264
        %v409 = vunpack.c.l.b16 %v265
        %v410 = vunpack.c.l.b16 %v266
        %v411 = vunpack.c.l.b16 %v267
        %v412 = vunpack.c.l.b16 %v268
        %v413 = vunpack.c.l.b16 %v269
        %v414 = vunpack.c.l.b16 %v270
        %v415 = vunpack.c.l.b16 %v271
        %v416 = vunpack.c.l.b16 %v272
        %v417 = vunpack.c.l.b16 %v273
        %v418 = vunpack.c.l.b16 %v274
        %v419 = vunpack.c.l.b16 %v275
        %v420 = vunpack.c.l.b16 %v276
        %v421 = vunpack.c.l.b16 %v277
        %v422 = vunpack.c.l.b16 %v278
        %v423 = vunpack.c.l.b16 %v279
        %v424 = vunpack.c.l.b16 %v280
        %v425 = vunpack.c.l.b16 %v281
        %v426 = vunpack.c.l.b16 %v282
        %v427 = vpack.c.b16 %v396, %v395
        %v428 = vpack.c.b16 %v398, %v397
        %v429 = vpack.c.b16 %v400, %v399
        %v430 = vpack.c.b16 %v402, %v401
        %v431 = vpack.c.b16 %v404, %v403
        %v432 = vpack.c.b16 %v406, %v405
        %v433 = vpack.c.b16 %v408, %v407
        %v434 = vpack.c.b16 %v410, %v409
        %v435 = vpack.c.b16 %v412, %v411
        %v436 = vpack.c.b16 %v414, %v413
        %v437 = vpack.c.b16 %v416, %v415
        %v438 = vpack.c.b16 %v418, %v417
        %v439 = vpack.c.b16 %v420, %v419
        %v440 = vpack.c.b16 %v422, %v421
        %v441 = vpack.c.b16 %v424, %v423
        %v442 = vpack.c.b16 %v426, %v425
        %459 = vmatpush.bf16.msra.mxu0 %v434
        %460 = vmatpush.bf16.msra.mxu0 %v433
        %461 = vmatpush.bf16.msra.mxu0 %v432
        %462 = vmatpush.bf16.msra.mxu0 %v431
        %463 = vmatpush.bf16.msra.mxu0 %v430
        %464 = vmatpush.bf16.msra.mxu0 %v429
        %465 = vmatpush.bf16.msra.mxu0 %v428
        %466 = vmatpush.bf16.msra.mxu0 %v427
        %467 = vmatmul.bf16.gmra.mxu0 %v331
        %v468 = vpop.f32.mrf.mxu0
        %v469 = vadd.f32 0.0, %v468
        %v470 = vpop.f32.mrf.mxu0
        %v471 = vadd.f32 0.0, %v470
        %472 = vmatmul.bf16.gmra.mxu0 %v333
        %v473 = vpop.f32.mrf.mxu0
        %v474 = vadd.f32 0.0, %v473
        %v475 = vpop.f32.mrf.mxu0
        %v476 = vadd.f32 0.0, %v475
        %477 = vmatmul.bf16.gmra.mxu0 %v335
        %v478 = vpop.f32.mrf.mxu0
        %v479 = vadd.f32 0.0, %v478
        %v480 = vpop.f32.mrf.mxu0
        %v481 = vadd.f32 0.0, %v480
        %482 = vmatmul.bf16.gmra.mxu0 %v337
        %v483 = vpop.f32.mrf.mxu0
        %v484 = vadd.f32 0.0, %v483
        %v485 = vpop.f32.mrf.mxu0
        %v486 = vadd.f32 0.0, %v485
        %487 = vmatmul.bf16.gmra.mxu0 %v339
        %v488 = vpop.f32.mrf.mxu0
        %v489 = vadd.f32 0.0, %v488
        %v490 = vpop.f32.mrf.mxu0
        %v491 = vadd.f32 0.0, %v490
        %492 = vmatmul.bf16.gmra.mxu0 %v341
        %v493 = vpop.f32.mrf.mxu0
        %v494 = vadd.f32 0.0, %v493
        %v495 = vpop.f32.mrf.mxu0
        %v496 = vadd.f32 0.0, %v495
        %497 = vmatmul.bf16.gmra.mxu0 %v343
        %v498 = vpop.f32.mrf.mxu0
        %v499 = vadd.f32 0.0, %v498
        %v500 = vpop.f32.mrf.mxu0
        %v501 = vadd.f32 0.0, %v500
        %502 = vmatmul.bf16.gmra.mxu0 %v345
        %v503 = vpop.f32.mrf.mxu0
        %v504 = vadd.f32 0.0, %v503
        %v505 = vpop.f32.mrf.mxu0
        %v506 = vadd.f32 0.0, %v505
        %507 = vdwg.mxu0
        %508 = vmatpush.bf16.msra.mxu0 %v442
        %509 = vmatpush.bf16.msra.mxu0 %v441
        %510 = vmatpush.bf16.msra.mxu0 %v440
        %511 = vmatpush.bf16.msra.mxu0 %v439
        %512 = vmatpush.bf16.msra.mxu0 %v438
        %513 = vmatpush.bf16.msra.mxu0 %v437
        %514 = vmatpush.bf16.msra.mxu0 %v436
        %515 = vmatpush.bf16.msra.mxu0 %v435
        %516 = vmatmul.bf16.gmra.mxu0 %v332
        %v517 = vpop.f32.mrf.mxu0
        %v518 = vadd.f32 %v469, %v517
        %v519 = vpop.f32.mrf.mxu0
        %v520 = vadd.f32 %v471, %v519
        %521 = vmatmul.bf16.gmra.mxu0 %v334
        %v522 = vpop.f32.mrf.mxu0
        %v523 = vadd.f32 %v474, %v522
        %v524 = vpop.f32.mrf.mxu0
        %v525 = vadd.f32 %v476, %v524
        %526 = vmatmul.bf16.gmra.mxu0 %v336
        %v527 = vpop.f32.mrf.mxu0
        %v528 = vadd.f32 %v479, %v527
        %v529 = vpop.f32.mrf.mxu0
        %v530 = vadd.f32 %v481, %v529
        %531 = vmatmul.bf16.gmra.mxu0 %v338
        %v532 = vpop.f32.mrf.mxu0
        %v533 = vadd.f32 %v484, %v532
        %v534 = vpop.f32.mrf.mxu0
        %v535 = vadd.f32 %v486, %v534
        %536 = vmatmul.bf16.gmra.mxu0 %v340
        %v537 = vpop.f32.mrf.mxu0
        %v538 = vadd.f32 %v489, %v537
        %v539 = vpop.f32.mrf.mxu0
        %v540 = vadd.f32 %v491, %v539
        %541 = vmatmul.bf16.gmra.mxu0 %v342
        %v542 = vpop.f32.mrf.mxu0
        %v543 = vadd.f32 %v494, %v542
        %v544 = vpop.f32.mrf.mxu0
        %v545 = vadd.f32 %v496, %v544
        %546 = vmatmul.bf16.gmra.mxu0 %v344
        %v547 = vpop.f32.mrf.mxu0
        %v548 = vadd.f32 %v499, %v547
        %v549 = vpop.f32.mrf.mxu0
        %v550 = vadd.f32 %v501, %v549
        %551 = vmatmul.bf16.gmra.mxu0 %v346
        %v552 = vpop.f32.mrf.mxu0
        %v553 = vadd.f32 %v504, %v552
        %v554 = vpop.f32.mrf.mxu0
        %v555 = vadd.f32 %v506, %v554
        %556 = vdwg.mxu0
        %v557 = vadd.f32 %v219, %v518
        %v558 = vadd.f32 %v220, %v520
        %v559 = vadd.f32 %v221, %v523
        %v560 = vadd.f32 %v222, %v525
        %v561 = vadd.f32 %v223, %v528
        %v562 = vadd.f32 %v224, %v530
        %v563 = vadd.f32 %v225, %v533
        %v564 = vadd.f32 %v226, %v535
        %v565 = vadd.f32 %v227, %v538
        %v566 = vadd.f32 %v228, %v540
        %v567 = vadd.f32 %v229, %v543
        %v568 = vadd.f32 %v230, %v545
        %v569 = vadd.f32 %v231, %v548
        %v570 = vadd.f32 %v232, %v550
        %v571 = vadd.f32 %v233, %v553
        %v572 = vadd.f32 %v234, %v555
        %573 = vst [vmem:[#allocation2] sm:$0xff] %v557
        %574 = vst [vmem:[#allocation2 + $0x8] sm:$0xff] %v558
        %575 = vst [vmem:[#allocation2 + $0x10] sm:$0xff] %v559
        %576 = vst [vmem:[#allocation2 + $0x18] sm:$0xff] %v560
        %577 = vst [vmem:[#allocation2 + $0x20] sm:$0xff] %v561
        %578 = vst [vmem:[#allocation2 + $0x28] sm:$0xff] %v562
        %579 = vst [vmem:[#allocation2 + $0x30] sm:$0xff] %v563
        %580 = vst [vmem:[#allocation2 + $0x38] sm:$0xff] %v564
        %581 = vst [vmem:[#allocation2 + $0x40] sm:$0xff] %v565
        %582 = vst [vmem:[#allocation2 + $0x48] sm:$0xff] %v566
        %583 = vst [vmem:[#allocation2 + $0x50] sm:$0xff] %v567
        %584 = vst [vmem:[#allocation2 + $0x58] sm:$0xff] %v568
        %585 = vst [vmem:[#allocation2 + $0x60] sm:$0xff] %v569
        %586 = vst [vmem:[#allocation2 + $0x68] sm:$0xff] %v570
        %587 = vst [vmem:[#allocation2 + $0x70] sm:$0xff] %v571
        %588 = vst [vmem:[#allocation2 + $0x78] sm:$0xff] %v572
        // Predicated region
        $region33: #{mixhop_forward.5} parent=27 // pred_check
          %p589 = pneg %p199
        $region34: #{mixhop_forward.5} parent=27 // pred_check_branch
          %591 = sbr.rel (%p589) target = $region36
        $region35: #{mixhop_forward.5} parent=27 // pred_region
          %v592 = vld [vmem:[#allocation2] sm:$0xff]
          %v593 = vld [vmem:[#allocation2 + $0x8] sm:$0xff]
          %v594 = vld [vmem:[#allocation2 + $0x10] sm:$0xff]
          %v595 = vld [vmem:[#allocation2 + $0x18] sm:$0xff]
          %v596 = vld [vmem:[#allocation2 + $0x20] sm:$0xff]
          %v597 = vld [vmem:[#allocation2 + $0x28] sm:$0xff]
          %v598 = vld [vmem:[#allocation2 + $0x30] sm:$0xff]
          %v599 = vld [vmem:[#allocation2 + $0x38] sm:$0xff]
          %v600 = vld [vmem:[#allocation2 + $0x40] sm:$0xff]
          %v601 = vld [vmem:[#allocation2 + $0x48] sm:$0xff]
          %v602 = vld [vmem:[#allocation2 + $0x50] sm:$0xff]
          %v603 = vld [vmem:[#allocation2 + $0x58] sm:$0xff]
          %v604 = vld [vmem:[#allocation2 + $0x60] sm:$0xff]
          %v605 = vld [vmem:[#allocation2 + $0x68] sm:$0xff]
          %v606 = vld [vmem:[#allocation2 + $0x70] sm:$0xff]
          %v607 = vld [vmem:[#allocation2 + $0x78] sm:$0xff]
          %608 = vst [vmem:[%s179] sm:$0xff] %v592
          %609 = vst [vmem:[%s179 + $0x8] sm:$0xff] %v593
          %610 = vst [vmem:[%s179 + $0x10] sm:$0xff] %v594
          %611 = vst [vmem:[%s179 + $0x18] sm:$0xff] %v595
          %612 = vst [vmem:[%s179 + $0x20] sm:$0xff] %v596
          %613 = vst [vmem:[%s179 + $0x28] sm:$0xff] %v597
          %614 = vst [vmem:[%s179 + $0x30] sm:$0xff] %v598
          %615 = vst [vmem:[%s179 + $0x38] sm:$0xff] %v599
          %616 = vst [vmem:[%s179 + $0x40] sm:$0xff] %v600
          %617 = vst [vmem:[%s179 + $0x48] sm:$0xff] %v601
          %618 = vst [vmem:[%s179 + $0x50] sm:$0xff] %v602
          %619 = vst [vmem:[%s179 + $0x58] sm:$0xff] %v603
          %620 = vst [vmem:[%s179 + $0x60] sm:$0xff] %v604
          %621 = vst [vmem:[%s179 + $0x68] sm:$0xff] %v605
          %622 = vst [vmem:[%s179 + $0x70] sm:$0xff] %v606
          %623 = vst [vmem:[%s179 + $0x78] sm:$0xff] %v607
        $region36: #{mixhop_forward.5} parent=27 // pred_fallthru
          _
        %s624 = sand.u32 %s91, 1
        %s625 = scalar_lea.sflag [#allocation4], %s624
        %s626 = sand.u32 %s91, 1
        %s627 = smul.addr %s626, 128
        %s628 = scalar_lea.vmem [#allocation3], %s627
        // Predicated region
        $region37: #{mixhop_forward.5} parent=27 // pred_check
          %p629 = pneg %p101
        $region38: #{mixhop_forward.5} parent=27 // pred_check_branch
          %631 = sbr.rel (%p629) target = $region40
        $region39: #{mixhop_forward.5} parent=27 // pred_region
          %s632 = smul.u32 16, %s21
          %634 = vsyncadd %s625, 0
          %s635 = smul.addr %s632, 3
          %s636 = sadd.s32 2, %s635
          %s637 = smul.addr %s636, 8
          %s638 = scalar_lea.hbm %s3, %s637
          %s639 = sshll.u32 %s628, 4
          %s640 = int_to_ptr.vmem [resolvable:$true] %s639
          %s641 = sshll.u32 %s638, 4
          %s642 = int_to_ptr.hbm [resolvable:$true] %s641
          %647 = dma.vmem_to_hbm [thread:$0]  %s640, 2048, %s642, %s625, 128, 384, 8
        $region40: #{mixhop_forward.5} parent=27 // pred_fallthru
          _
      $region28: #{mixhop_forward.5} parent=5 // pred_fallthru
        _
      %p648 = scmp.le.s32.totalorder 2, %s12
      // Predicated region
      $region41: #{mixhop_forward.5} parent=5 // pred_check
        %p649 = pneg %p648
      $region42: #{mixhop_forward.5} parent=5 // pred_check_branch
        %651 = sbr.rel (%p649) target = $region44
      $region43: #{mixhop_forward.5} parent=5 // pred_region
        %s652 = ssub.s32 %s12, 2
        // Predicated region
        $region45: #{mixhop_forward.5} parent=43 // pred_check
          %p653 = pneg %p107
        $region46: #{mixhop_forward.5} parent=43 // pred_check_branch
          %655 = sbr.rel (%p653) target = $region48
        $region47: #{mixhop_forward.5} parent=43 // pred_region
          %s656 = sand.u32 %s92, 1
          %s657 = scalar_lea.sflag [#allocation4], %s656
          %s658 = sand.u32 %s92, 1
          %s659 = smul.addr %s658, 128
          %s660 = scalar_lea.vmem [#allocation3], %s659
          %662 = dma.done %s657, 2048
        $region48: #{mixhop_forward.5} parent=43 // pred_fallthru
          _
      $region44: #{mixhop_forward.5} parent=5 // pred_fallthru
        _
    $region6: #{mixhop_forward.5} parent=1 // loop_footer
      %s16 = sadd.s32 1, %s12
    $region7: #{mixhop_forward.5} parent=1 // loop_footer_branch
      %11 = sbr.rel target = $region3
    $region8: #{mixhop_forward.5} parent=1 // loop_exit
      _
    %663 = vsyncpa [#allocation4], 1
    %s664 = scalar_lea.sflag [#allocation4], 1
    %665 = vsyncpa %s664, 1

// kernel: mixhop_forward.3
$region0: #{mixhop_forward.3}
  #allocation0 [shape = 'u32[]', space=smem, size = 0x4, offset = 0x4, fixed_abs, tag = 'smem constant byte address 0x4 - core index']
  #allocation1 [shape = 'u32[72,128]{1,0:T(1,128)}', space=vmem, size = 0x9000, scoped, tag = 'internal scratch']
  %s0 = inlined_call_operand.vmem [shape: bf16[256,128], index: 0, kind: input, shape index: {}]
  %s1 = inlined_call_operand.vmem [shape: bf16[128,384], index: 1, kind: input, shape index: {}]
  %s2 = inlined_call_operand.vmem [shape: f32[1,384], index: 2, kind: input, shape index: {}]
  %s3 = inlined_call_operand.vmem [shape: f32[256,384], index: 3, kind: output, shape index: {0}]
  %s4 = inlined_call_operand.vmem [shape: bf16[256,256], index: 4, kind: output, shape index: {1}]
  %5 = xla_tuple %s3, %s4
  %s6 = sld [smem:[#allocation0]]
  $region87: #{mixhop_forward.3} parent=0
    _
  %s8 = ssub.s32 1, %s6
  %s9 = scalar_select 0, %s8, %s6
  $region1: #{mixhop_forward.3} parent=0
    #allocation2 [shape = 'u8[131072]{0}', space=vmem, size = 0x20000, scoped, tag = 'output window, operand 0']
    loop: start=0, step=1, limit=4
    $region2: #{mixhop_forward.3} parent=1 // loop_pre_header
      _
    $region3: #{mixhop_forward.3} parent=1 // loop_header
      %s11 = sphi 0, %s15
      %p12 = scmp.ge.s32.totalorder %s11, 4
      %s21 = sphi 0, %s23
      %s24 = sphi 0, %s21
      %s25 = sphi 0, %s24
      %s41 = sphi 0, %s25
      %s45 = sphi 0, %s45
      %s47 = sphi 0, %s45
      %s48 = sphi 0, %s47
      %s62 = sphi 0, %s48
      %s66 = sphi 0, %s66
      %s68 = sphi 0, %s66
      %s69 = sphi 0, %s68
      %s83 = sphi 0, %s69
      %s89 = sphi 0, %s91
      %s92 = sphi 0, %s89
      %s93 = sphi 0, %s92
      %s109 = sphi 0, %s93
      %s115 = sphi 0, %s117
      %s118 = sphi 0, %s115
      %s119 = sphi 0, %s118
      %s135 = sphi 0, %s119
    $region4: #{mixhop_forward.3} parent=1 // loop_header_branch
      %14 = sbr.rel (%p12) target = $region8
    $region5: #{mixhop_forward.3} parent=1 // loop_body
      %s16 = ssub.s32 %s11, 1
      %s17 = ssub.s32 %s11, 2
      %s18 = sadd.s32 %s11, 1
      %s19 = ssub.s32 %s11, %s18
      %p20 = scmp.eq.s32.totalorder %s19, 0
      %s22 = sadd.s32 %s21, 1
      %s23 = scalar_select %p20, %s21, %s22
      %p26 = pneg %p20
      %p27 = scmp.eq.s32.totalorder %s11, 1
      %p28 = por %p26, %p27
      %p29 = scmp.ne.s32.totalorder %s21, %s24
      %p30 = scmp.eq.s32.totalorder %s11, 0
      %p31 = por %p29, %p30
      %p32 = scmp.ne.s32.totalorder %s21, %s24
      %p33 = scmp.eq.s32.totalorder %s16, 1
      %p34 = por %p32, %p33
      %p35 = scmp.ne.s32.totalorder %s24, %s25
      %p36 = scmp.eq.s32.totalorder %s16, 0
      %p37 = por %p35, %p36
      %p38 = scmp.ne.s32.totalorder %s24, %s25
      %p39 = scmp.eq.s32.totalorder %s17, 1
      %p40 = por %p38, %p39
      %p42 = scmp.ne.s32.totalorder %s25, %s41
      %p43 = scmp.eq.s32.totalorder %s17, 0
      %p44 = por %p42, %p43
      %s46 = sadd.s32 %s45, 1
      %p49 = scmp.eq.s32.totalorder %s11, 1
      %p50 = scmp.ne.s32.totalorder %s45, %s47
      %p51 = scmp.eq.s32.totalorder %s11, 0
      %p52 = por %p50, %p51
      %p53 = scmp.ne.s32.totalorder %s45, %s47
      %p54 = scmp.eq.s32.totalorder %s16, 1
      %p55 = por %p53, %p54
      %p56 = scmp.ne.s32.totalorder %s47, %s48
      %p57 = scmp.eq.s32.totalorder %s16, 0
      %p58 = por %p56, %p57
      %p59 = scmp.ne.s32.totalorder %s47, %s48
      %p60 = scmp.eq.s32.totalorder %s17, 1
      %p61 = por %p59, %p60
      %p63 = scmp.ne.s32.totalorder %s48, %s62
      %p64 = scmp.eq.s32.totalorder %s17, 0
      %p65 = por %p63, %p64
      %s67 = sadd.s32 %s66, 1
      %p70 = scmp.eq.s32.totalorder %s11, 1
      %p71 = scmp.ne.s32.totalorder %s66, %s68
      %p72 = scmp.eq.s32.totalorder %s11, 0
      %p73 = por %p71, %p72
      %p74 = scmp.ne.s32.totalorder %s66, %s68
      %p75 = scmp.eq.s32.totalorder %s16, 1
      %p76 = por %p74, %p75
      %p77 = scmp.ne.s32.totalorder %s68, %s69
      %p78 = scmp.eq.s32.totalorder %s16, 0
      %p79 = por %p77, %p78
      %p80 = scmp.ne.s32.totalorder %s68, %s69
      %p81 = scmp.eq.s32.totalorder %s17, 1
      %p82 = por %p80, %p81
      %p84 = scmp.ne.s32.totalorder %s69, %s83
      %p85 = scmp.eq.s32.totalorder %s17, 0
      %p86 = por %p84, %p85
      %s87 = ssub.s32 %s11, %s18
      %p88 = scmp.eq.s32.totalorder %s87, 0
      %s90 = sadd.s32 %s89, 1
      %s91 = scalar_select %p88, %s89, %s90
      %p94 = pneg %p88
      %p95 = scmp.eq.s32.totalorder %s11, 1
      %p96 = por %p94, %p95
      %p97 = scmp.ne.s32.totalorder %s89, %s92
      %p98 = scmp.eq.s32.totalorder %s11, 0
      %p99 = por %p97, %p98
      %p100 = scmp.ne.s32.totalorder %s89, %s92
      %p101 = scmp.eq.s32.totalorder %s16, 1
      %p102 = por %p100, %p101
      %p103 = scmp.ne.s32.totalorder %s92, %s93
      %p104 = scmp.eq.s32.totalorder %s16, 0
      %p105 = por %p103, %p104
      %p106 = scmp.ne.s32.totalorder %s92, %s93
      %p107 = scmp.eq.s32.totalorder %s17, 1
      %p108 = por %p106, %p107
      %p110 = scmp.ne.s32.totalorder %s93, %s109
      %p111 = scmp.eq.s32.totalorder %s17, 0
      %p112 = por %p110, %p111
      %s113 = ssub.s32 %s11, %s18
      %p114 = scmp.eq.s32.totalorder %s113, 0
      %s116 = sadd.s32 %s115, 1
      %s117 = scalar_select %p114, %s115, %s116
      %p120 = pneg %p114
      %p121 = scmp.eq.s32.totalorder %s11, 1
      %p122 = por %p120, %p121
      %p123 = scmp.ne.s32.totalorder %s115, %s118
      %p124 = scmp.eq.s32.totalorder %s11, 0
      %p125 = por %p123, %p124
      %p126 = scmp.ne.s32.totalorder %s115, %s118
      %p127 = scmp.eq.s32.totalorder %s16, 1
      %p128 = por %p126, %p127
      %p129 = scmp.ne.s32.totalorder %s118, %s119
      %p130 = scmp.eq.s32.totalorder %s16, 0
      %p131 = por %p129, %p130
      %p132 = scmp.ne.s32.totalorder %s118, %s119
      %p133 = scmp.eq.s32.totalorder %s17, 1
      %p134 = por %p132, %p133
      %p136 = scmp.ne.s32.totalorder %s119, %s135
      %p137 = scmp.eq.s32.totalorder %s17, 0
      %p138 = por %p136, %p137
      %p139 = scmp.le.s32.totalorder 1, %s11
      %p140 = scmp.lt.s32.totalorder %s11, 3
      %p141 = pnand %p139, %p140
      %p142 = pneg %p141
      // Predicated region
      $region9: #{mixhop_forward.3} parent=5 // pred_check
        _
      $region10: #{mixhop_forward.3} parent=5 // pred_check_branch
        %144 = sbr.rel (%p141) target = $region12
      $region11: #{mixhop_forward.3} parent=5 // pred_region
        %s145 = ssub.s32 %s11, 1
        // Predicated region
        $region13: #{mixhop_forward.3} parent=11 // pred_check
          %p146 = pneg %p58
        $region14: #{mixhop_forward.3} parent=11 // pred_check_branch
          %148 = sbr.rel (%p146) target = $region16
        $region15: #{mixhop_forward.3} parent=11 // pred_region
          _
        $region16: #{mixhop_forward.3} parent=11 // pred_fallthru
          _
        // Predicated region
        $region17: #{mixhop_forward.3} parent=11 // pred_check
          %p149 = pneg %p79
        $region18: #{mixhop_forward.3} parent=11 // pred_check_branch
          %151 = sbr.rel (%p149) target = $region20
        $region19: #{mixhop_forward.3} parent=11 // pred_region
          _
        $region20: #{mixhop_forward.3} parent=11 // pred_fallthru
          _
      $region12: #{mixhop_forward.3} parent=5 // pred_fallthru
        _
      %p152 = scmp.lt.s32.totalorder %s11, 2
      // Predicated region
      $region21: #{mixhop_forward.3} parent=5 // pred_check
        %p153 = pneg %p152
      $region22: #{mixhop_forward.3} parent=5 // pred_check_branch
        %155 = sbr.rel (%p153) target = $region24
      $region23: #{mixhop_forward.3} parent=5 // pred_region
        // Predicated region
        $region25: #{mixhop_forward.3} parent=23 // pred_check
          %p156 = pneg %p31
        $region26: #{mixhop_forward.3} parent=23 // pred_check_branch
          %158 = sbr.rel (%p156) target = $region28
        $region27: #{mixhop_forward.3} parent=23 // pred_region
          %s159 = smul.u32 16, %s11
          %p160 = scmp.lt.s32.totalorder %s159, 31
          %s161 = scalar_select %p160, %s159, 31
          %s162 = smul.addr %s161, 4
          %s163 = scalar_lea.vmem %s0, %s162
          %s164 = smul.u32 16, %s11
        $region28: #{mixhop_forward.3} parent=23 // pred_fallthru
          _
      $region24: #{mixhop_forward.3} parent=5 // pred_fallthru
        _
      %p165 = scmp.le.s32.totalorder 1, %s11
      %p166 = scmp.lt.s32.totalorder %s11, 3
      %p167 = pnand %p165, %p166
      %p168 = pneg %p167
      // Predicated region
      $region29: #{mixhop_forward.3} parent=5 // pred_check
        _
      $region30: #{mixhop_forward.3} parent=5 // pred_check_branch
        %170 = sbr.rel (%p167) target = $region32
      $region31: #{mixhop_forward.3} parent=5 // pred_region
        %s171 = ssub.s32 %s11, 1
        %s172 = smul.u32 16, %s16
        %p173 = scmp.lt.s32.totalorder %s172, 31
        %s174 = scalar_select %p173, %s172, 31
        %s175 = smul.addr %s174, 4
        %s176 = scalar_lea.vmem %s0, %s175
        %p177 = pneg %p37
        %p178 = pneg %p34
        %p179 = pneg %p58
        %p180 = pneg %p55
        %p181 = pneg %p79
        %p182 = pneg %p76
        %p183 = pneg %p105
        %p184 = pneg %p102
        %s185 = sand.u32 %s92, 1
        %s186 = sand.u32 %s92, 1
        %s187 = smul.addr %s186, 128
        %s188 = scalar_lea.vmem [#allocation2], %s187
        %p189 = pneg %p131
        %p190 = pneg %p128
        %s191 = smul.u32 16, %s16
        %p192 = scmp.lt.s32.totalorder %s191, 31
        %s193 = scalar_select %p192, %s191, 31
        %s194 = smul.addr %s193, 2
        %s195 = smul.addr %s194, 4
        %s196 = scalar_lea.vmem %s4, %s195
        %s197 = smul.u32 16, %s16
        %p198 = scmp.lt.s32.totalorder %s197, 31
        %s199 = scalar_select %p198, %s197, 31
        %s200 = smul.addr %s199, 4
        %s201 = scalar_lea.vmem %s0, %s200
        %s202 = smul.u32 16, %s16
        %s203 = smul.u32 16, %s16
        %s204 = smul.u32 16, %s16
        %p205 = scmp.lt.s32.totalorder %s204, 31
        %s206 = scalar_select %p205, %s204, 31
        %s207 = smul.addr %s206, 2
        %s208 = smul.addr %s207, 4
        %s209 = scalar_lea.vmem %s4, %s208
        %s210 = smul.u32 16, %s16
        %v211 = vld [vmem:[%s201] sm:$0xf]
        %v212 = vld [vmem:[%s201 + $0x4] sm:$0xf]
        %v213 = vld [vmem:[%s201 + $0x8] sm:$0xf]
        %v214 = vld [vmem:[%s201 + $0xc] sm:$0xf]
        %v215 = vld [vmem:[%s201 + $0x10] sm:$0xf]
        %v216 = vld [vmem:[%s201 + $0x14] sm:$0xf]
        %v217 = vld [vmem:[%s201 + $0x18] sm:$0xf]
        %v218 = vld [vmem:[%s201 + $0x1c] sm:$0xf]
        %v219 = vld [vmem:[%s201 + $0x20] sm:$0xf]
        %v220 = vld [vmem:[%s201 + $0x24] sm:$0xf]
        %v221 = vld [vmem:[%s201 + $0x28] sm:$0xf]
        %v222 = vld [vmem:[%s201 + $0x2c] sm:$0xf]
        %v223 = vld [vmem:[%s201 + $0x30] sm:$0xf]
        %v224 = vld [vmem:[%s201 + $0x34] sm:$0xf]
        %v225 = vld [vmem:[%s201 + $0x38] sm:$0xf]
        %v226 = vld [vmem:[%s201 + $0x3c] sm:$0xf]
        %v227 = vld [vmem:[%s1] sm:$0xff]
        %v228 = vld [vmem:[%s1 + $0x8] sm:$0xf]
        %v229 = vld [vmem:[%s1 + $0xc] sm:$0xff]
        %v230 = vld [vmem:[%s1 + $0x14] sm:$0xf]
        %v231 = vld [vmem:[%s1 + $0x18] sm:$0xff]
        %v232 = vld [vmem:[%s1 + $0x20] sm:$0xf]
        %v233 = vld [vmem:[%s1 + $0x24] sm:$0xff]
        %v234 = vld [vmem:[%s1 + $0x2c] sm:$0xf]
        %v235 = vld [vmem:[%s1 + $0x30] sm:$0xff]
        %v236 = vld [vmem:[%s1 + $0x38] sm:$0xf]
        %v237 = vld [vmem:[%s1 + $0x3c] sm:$0xff]
        %v238 = vld [vmem:[%s1 + $0x44] sm:$0xf]
        %v239 = vld [vmem:[%s1 + $0x48] sm:$0xff]
        %v240 = vld [vmem:[%s1 + $0x50] sm:$0xf]
        %v241 = vld [vmem:[%s1 + $0x54] sm:$0xff]
        %v242 = vld [vmem:[%s1 + $0x5c] sm:$0xf]
        %v243 = vld [vmem:[%s1 + $0x60] sm:$0xff]
        %v244 = vld [vmem:[%s1 + $0x68] sm:$0xf]
        %v245 = vld [vmem:[%s1 + $0x6c] sm:$0xff]
        %v246 = vld [vmem:[%s1 + $0x74] sm:$0xf]
        %v247 = vld [vmem:[%s1 + $0x78] sm:$0xff]
        %v248 = vld [vmem:[%s1 + $0x80] sm:$0xf]
        %v249 = vld [vmem:[%s1 + $0x84] sm:$0xff]
        %v250 = vld [vmem:[%s1 + $0x8c] sm:$0xf]
        %v251 = vld [vmem:[%s1 + $0x90] sm:$0xff]
        %v252 = vld [vmem:[%s1 + $0x98] sm:$0xf]
        %v253 = vld [vmem:[%s1 + $0x9c] sm:$0xff]
        %v254 = vld [vmem:[%s1 + $0xa4] sm:$0xf]
        %v255 = vld [vmem:[%s1 + $0xa8] sm:$0xff]
        %v256 = vld [vmem:[%s1 + $0xb0] sm:$0xf]
        %v257 = vld [vmem:[%s1 + $0xb4] sm:$0xff]
        %v258 = vld [vmem:[%s1 + $0xbc] sm:$0xf]
        %v259 = vld [vmem:[%s2] sm:$0x7]
        %v261 = vperm.slane %v259, 0
        %v262 = vperm.slane %v259, 1
        %v263 = vperm.slane %v259, 2
        %v283 = vunpack.c.l.b16 %v211
        %v284 = vunpack.c.l.b16 %v212
        %v285 = vunpack.c.l.b16 %v213
        %v286 = vunpack.c.l.b16 %v214
        %v287 = vunpack.c.l.b16 %v215
        %v288 = vunpack.c.l.b16 %v216
        %v289 = vunpack.c.l.b16 %v217
        %v290 = vunpack.c.l.b16 %v218
        %v291 = vunpack.c.l.b16 %v219
        %v292 = vunpack.c.l.b16 %v220
        %v293 = vunpack.c.l.b16 %v221
        %v294 = vunpack.c.l.b16 %v222
        %v295 = vunpack.c.l.b16 %v223
        %v296 = vunpack.c.l.b16 %v224
        %v297 = vunpack.c.l.b16 %v225
        %v298 = vunpack.c.l.b16 %v226
        %v299 = vpack.c.b16 %v284, %v283
        %v300 = vpack.c.b16 %v286, %v285
        %v301 = vpack.c.b16 %v288, %v287
        %v302 = vpack.c.b16 %v290, %v289
        %v303 = vpack.c.b16 %v292, %v291
        %v304 = vpack.c.b16 %v294, %v293
        %v305 = vpack.c.b16 %v296, %v295
        %v306 = vpack.c.b16 %v298, %v297
        %v347 = vunpack.c.l.b16 %v227
        %v348 = vunpack.c.h.b16 %v227
        %v349 = vunpack.c.l.b16 %v228
        %v350 = vunpack.c.l.b16 %v229
        %v351 = vunpack.c.h.b16 %v229
        %v352 = vunpack.c.l.b16 %v230
        %v353 = vunpack.c.l.b16 %v231
        %v354 = vunpack.c.h.b16 %v231
        %v355 = vunpack.c.l.b16 %v232
        %v356 = vunpack.c.l.b16 %v233
        %v357 = vunpack.c.h.b16 %v233
        %v358 = vunpack.c.l.b16 %v234
        %v359 = vunpack.c.l.b16 %v235
        %v360 = vunpack.c.h.b16 %v235
        %v361 = vunpack.c.l.b16 %v236
        %v362 = vunpack.c.l.b16 %v237
        %v363 = vunpack.c.h.b16 %v237
        %v364 = vunpack.c.l.b16 %v238
        %v365 = vunpack.c.l.b16 %v239
        %v366 = vunpack.c.h.b16 %v239
        %v367 = vunpack.c.l.b16 %v240
        %v368 = vunpack.c.l.b16 %v241
        %v369 = vunpack.c.h.b16 %v241
        %v370 = vunpack.c.l.b16 %v242
        %v371 = vunpack.c.l.b16 %v243
        %v372 = vunpack.c.h.b16 %v243
        %v373 = vunpack.c.l.b16 %v244
        %v374 = vunpack.c.l.b16 %v245
        %v375 = vunpack.c.h.b16 %v245
        %v376 = vunpack.c.l.b16 %v246
        %v377 = vunpack.c.l.b16 %v247
        %v378 = vunpack.c.h.b16 %v247
        %v379 = vunpack.c.l.b16 %v248
        %v380 = vunpack.c.l.b16 %v249
        %v381 = vunpack.c.h.b16 %v249
        %v382 = vunpack.c.l.b16 %v250
        %v383 = vunpack.c.l.b16 %v251
        %v384 = vunpack.c.h.b16 %v251
        %v385 = vunpack.c.l.b16 %v252
        %v386 = vunpack.c.l.b16 %v253
        %v387 = vunpack.c.h.b16 %v253
        %v388 = vunpack.c.l.b16 %v254
        %v389 = vunpack.c.l.b16 %v255
        %v390 = vunpack.c.h.b16 %v255
        %v391 = vunpack.c.l.b16 %v256
        %v392 = vunpack.c.l.b16 %v257
        %v393 = vunpack.c.h.b16 %v257
        %v394 = vunpack.c.l.b16 %v258
        %v395 = vpack.c.b16 %v350, %v347
        %v396 = vpack.c.b16 %v351, %v348
        %v397 = vpack.c.b16 %v352, %v349
        %v398 = vpack.c.b16 %v356, %v353
        %v399 = vpack.c.b16 %v357, %v354
        %v400 = vpack.c.b16 %v358, %v355
        %v401 = vpack.c.b16 %v362, %v359
        %v402 = vpack.c.b16 %v363, %v360
        %v403 = vpack.c.b16 %v364, %v361
        %v404 = vpack.c.b16 %v368, %v365
        %v405 = vpack.c.b16 %v369, %v366
        %v406 = vpack.c.b16 %v370, %v367
        %v407 = vpack.c.b16 %v374, %v371
        %v408 = vpack.c.b16 %v375, %v372
        %v409 = vpack.c.b16 %v376, %v373
        %v410 = vpack.c.b16 %v380, %v377
        %v411 = vpack.c.b16 %v381, %v378
        %v412 = vpack.c.b16 %v382, %v379
        %v413 = vpack.c.b16 %v386, %v383
        %v414 = vpack.c.b16 %v387, %v384
        %v415 = vpack.c.b16 %v388, %v385
        %v416 = vpack.c.b16 %v392, %v389
        %v417 = vpack.c.b16 %v393, %v390
        %v418 = vpack.c.b16 %v394, %v391
        %443 = vmatpush.bf16.msra.mxu0 %v416
        %444 = vmatpush.bf16.msra.mxu0 %v413
        %445 = vmatpush.bf16.msra.mxu0 %v410
        %446 = vmatpush.bf16.msra.mxu0 %v407
        %447 = vmatpush.bf16.msra.mxu0 %v404
        %448 = vmatpush.bf16.msra.mxu0 %v401
        %449 = vmatpush.bf16.msra.mxu0 %v398
        %450 = vmatpush.bf16.msra.mxu0 %v395
        %451 = vmatmul.bf16.gmra.mxu0 %v299
        %v452 = vpop.f32.mrf.mxu0
        %v453 = vadd.f32 %v261, %v452
        %v454 = vpop.f32.mrf.mxu0
        %v455 = vadd.f32 %v261, %v454
        %456 = vmatmul.bf16.gmra.mxu0 %v300
        %v457 = vpop.f32.mrf.mxu0
        %v458 = vadd.f32 %v261, %v457
        %v459 = vpop.f32.mrf.mxu0
        %v460 = vadd.f32 %v261, %v459
        %461 = vmatmul.bf16.gmra.mxu0 %v301
        %v462 = vpop.f32.mrf.mxu0
        %v463 = vadd.f32 %v261, %v462
        %v464 = vpop.f32.mrf.mxu0
        %v465 = vadd.f32 %v261, %v464
        %466 = vmatmul.bf16.gmra.mxu0 %v302
        %v467 = vpop.f32.mrf.mxu0
        %v468 = vadd.f32 %v261, %v467
        %v469 = vpop.f32.mrf.mxu0
        %v470 = vadd.f32 %v261, %v469
        %471 = vmatmul.bf16.gmra.mxu0 %v303
        %v472 = vpop.f32.mrf.mxu0
        %v473 = vadd.f32 %v261, %v472
        %v474 = vpop.f32.mrf.mxu0
        %v475 = vadd.f32 %v261, %v474
        %476 = vmatmul.bf16.gmra.mxu0 %v304
        %v477 = vpop.f32.mrf.mxu0
        %v478 = vadd.f32 %v261, %v477
        %v479 = vpop.f32.mrf.mxu0
        %v480 = vadd.f32 %v261, %v479
        %481 = vmatmul.bf16.gmra.mxu0 %v305
        %v482 = vpop.f32.mrf.mxu0
        %v483 = vadd.f32 %v261, %v482
        %v484 = vpop.f32.mrf.mxu0
        %v485 = vadd.f32 %v261, %v484
        %486 = vmatmul.bf16.gmra.mxu0 %v306
        %v487 = vpop.f32.mrf.mxu0
        %v488 = vadd.f32 %v261, %v487
        %v489 = vpop.f32.mrf.mxu0
        %v490 = vadd.f32 %v261, %v489
        %491 = vdwg.mxu0
        %492 = vmatpush.bf16.msra.mxu0 %v417
        %493 = vmatpush.bf16.msra.mxu0 %v414
        %494 = vmatpush.bf16.msra.mxu0 %v411
        %495 = vmatpush.bf16.msra.mxu0 %v408
        %496 = vmatpush.bf16.msra.mxu0 %v405
        %497 = vmatpush.bf16.msra.mxu0 %v402
        %498 = vmatpush.bf16.msra.mxu0 %v399
        %499 = vmatpush.bf16.msra.mxu0 %v396
        %500 = vmatmul.bf16.gmra.mxu0 %v299
        %v501 = vpop.f32.mrf.mxu0
        %v502 = vadd.f32 %v262, %v501
        %v503 = vpop.f32.mrf.mxu0
        %v504 = vadd.f32 %v262, %v503
        %505 = vmatmul.bf16.gmra.mxu0 %v300
        %v506 = vpop.f32.mrf.mxu0
        %v507 = vadd.f32 %v262, %v506
        %v508 = vpop.f32.mrf.mxu0
        %v509 = vadd.f32 %v262, %v508
        %510 = vmatmul.bf16.gmra.mxu0 %v301
        %v511 = vpop.f32.mrf.mxu0
        %v512 = vadd.f32 %v262, %v511
        %v513 = vpop.f32.mrf.mxu0
        %v514 = vadd.f32 %v262, %v513
        %515 = vmatmul.bf16.gmra.mxu0 %v302
        %v516 = vpop.f32.mrf.mxu0
        %v517 = vadd.f32 %v262, %v516
        %v518 = vpop.f32.mrf.mxu0
        %v519 = vadd.f32 %v262, %v518
        %520 = vmatmul.bf16.gmra.mxu0 %v303
        %v521 = vpop.f32.mrf.mxu0
        %v522 = vadd.f32 %v262, %v521
        %v523 = vpop.f32.mrf.mxu0
        %v524 = vadd.f32 %v262, %v523
        %525 = vmatmul.bf16.gmra.mxu0 %v304
        %v526 = vpop.f32.mrf.mxu0
        %v527 = vadd.f32 %v262, %v526
        %v528 = vpop.f32.mrf.mxu0
        %v529 = vadd.f32 %v262, %v528
        %530 = vmatmul.bf16.gmra.mxu0 %v305
        %v531 = vpop.f32.mrf.mxu0
        %v532 = vadd.f32 %v262, %v531
        %v533 = vpop.f32.mrf.mxu0
        %v534 = vadd.f32 %v262, %v533
        %535 = vmatmul.bf16.gmra.mxu0 %v306
        %v536 = vpop.f32.mrf.mxu0
        %v537 = vadd.f32 %v262, %v536
        %v538 = vpop.f32.mrf.mxu0
        %v539 = vadd.f32 %v262, %v538
        %540 = vdwg.mxu0
        %541 = vmatpush.bf16.msra.mxu0 %v418
        %542 = vmatpush.bf16.msra.mxu0 %v415
        %543 = vmatpush.bf16.msra.mxu0 %v412
        %544 = vmatpush.bf16.msra.mxu0 %v409
        %545 = vmatpush.bf16.msra.mxu0 %v406
        %546 = vmatpush.bf16.msra.mxu0 %v403
        %547 = vmatpush.bf16.msra.mxu0 %v400
        %548 = vmatpush.bf16.msra.mxu0 %v397
        %549 = vmatmul.bf16.gmra.mxu0 %v299
        %v550 = vpop.f32.mrf.mxu0
        %v551 = vadd.f32 %v263, %v550
        %v552 = vpop.f32.mrf.mxu0
        %v553 = vadd.f32 %v263, %v552
        %554 = vmatmul.bf16.gmra.mxu0 %v300
        %v555 = vpop.f32.mrf.mxu0
        %v556 = vadd.f32 %v263, %v555
        %v557 = vpop.f32.mrf.mxu0
        %v558 = vadd.f32 %v263, %v557
        %559 = vmatmul.bf16.gmra.mxu0 %v301
        %v560 = vpop.f32.mrf.mxu0
        %v561 = vadd.f32 %v263, %v560
        %v562 = vpop.f32.mrf.mxu0
        %v563 = vadd.f32 %v263, %v562
        %564 = vmatmul.bf16.gmra.mxu0 %v302
        %v565 = vpop.f32.mrf.mxu0
        %v566 = vadd.f32 %v263, %v565
        %v567 = vpop.f32.mrf.mxu0
        %v568 = vadd.f32 %v263, %v567
        %569 = vmatmul.bf16.gmra.mxu0 %v303
        %v570 = vpop.f32.mrf.mxu0
        %v571 = vadd.f32 %v263, %v570
        %v572 = vpop.f32.mrf.mxu0
        %v573 = vadd.f32 %v263, %v572
        %574 = vmatmul.bf16.gmra.mxu0 %v304
        %v575 = vpop.f32.mrf.mxu0
        %v576 = vadd.f32 %v263, %v575
        %v577 = vpop.f32.mrf.mxu0
        %v578 = vadd.f32 %v263, %v577
        %579 = vmatmul.bf16.gmra.mxu0 %v305
        %v580 = vpop.f32.mrf.mxu0
        %v581 = vadd.f32 %v263, %v580
        %v582 = vpop.f32.mrf.mxu0
        %v583 = vadd.f32 %v263, %v582
        %584 = vmatmul.bf16.gmra.mxu0 %v306
        %v585 = vpop.f32.mrf.mxu0
        %v586 = vadd.f32 %v263, %v585
        %v587 = vpop.f32.mrf.mxu0
        %v588 = vadd.f32 %v263, %v587
        %589 = vdwg.mxu0
        %590 = vst [vmem:[%s188] sm:$0xff] %v453
        %591 = vst [vmem:[%s188 + $0x8] sm:$0xff] %v455
        %592 = vst [vmem:[%s188 + $0x10] sm:$0xff] %v458
        %593 = vst [vmem:[%s188 + $0x18] sm:$0xff] %v460
        %594 = vst [vmem:[%s188 + $0x20] sm:$0xff] %v463
        %595 = vst [vmem:[%s188 + $0x28] sm:$0xff] %v465
        %596 = vst [vmem:[%s188 + $0x30] sm:$0xff] %v468
        %597 = vst [vmem:[%s188 + $0x38] sm:$0xff] %v470
        %598 = vst [vmem:[%s188 + $0x40] sm:$0xff] %v473
        %599 = vst [vmem:[%s188 + $0x48] sm:$0xff] %v475
        %600 = vst [vmem:[%s188 + $0x50] sm:$0xff] %v478
        %601 = vst [vmem:[%s188 + $0x58] sm:$0xff] %v480
        %602 = vst [vmem:[%s188 + $0x60] sm:$0xff] %v483
        %603 = vst [vmem:[%s188 + $0x68] sm:$0xff] %v485
        %604 = vst [vmem:[%s188 + $0x70] sm:$0xff] %v488
        %605 = vst [vmem:[%s188 + $0x78] sm:$0xff] %v490
        %v606 = vpack.c.bf16 %v551, %v502
        %v607 = vpack.c.bf16 %v553, %v504
        %v608 = vpack.c.bf16 %v556, %v507
        %v609 = vpack.c.bf16 %v558, %v509
        %v610 = vpack.c.bf16 %v561, %v512
        %v611 = vpack.c.bf16 %v563, %v514
        %v612 = vpack.c.bf16 %v566, %v517
        %v613 = vpack.c.bf16 %v568, %v519
        %v614 = vpack.c.bf16 %v571, %v522
        %v615 = vpack.c.bf16 %v573, %v524
        %v616 = vpack.c.bf16 %v576, %v527
        %v617 = vpack.c.bf16 %v578, %v529
        %v618 = vpack.c.bf16 %v581, %v532
        %v619 = vpack.c.bf16 %v583, %v534
        %v620 = vpack.c.bf16 %v586, %v537
        %v621 = vpack.c.bf16 %v588, %v539
        %622 = vst [vmem:[%s209] sm:$0xff] %v606
        %623 = vst [vmem:[%s209 + $0x8] sm:$0xff] %v607
        %624 = vst [vmem:[%s209 + $0x10] sm:$0xff] %v608
        %625 = vst [vmem:[%s209 + $0x18] sm:$0xff] %v609
        %626 = vst [vmem:[%s209 + $0x20] sm:$0xff] %v610
        %627 = vst [vmem:[%s209 + $0x28] sm:$0xff] %v611
        %628 = vst [vmem:[%s209 + $0x30] sm:$0xff] %v612
        %629 = vst [vmem:[%s209 + $0x38] sm:$0xff] %v613
        %630 = vst [vmem:[%s209 + $0x40] sm:$0xff] %v614
        %631 = vst [vmem:[%s209 + $0x48] sm:$0xff] %v615
        %632 = vst [vmem:[%s209 + $0x50] sm:$0xff] %v616
        %633 = vst [vmem:[%s209 + $0x58] sm:$0xff] %v617
        %634 = vst [vmem:[%s209 + $0x60] sm:$0xff] %v618
        %635 = vst [vmem:[%s209 + $0x68] sm:$0xff] %v619
        %636 = vst [vmem:[%s209 + $0x70] sm:$0xff] %v620
        %637 = vst [vmem:[%s209 + $0x78] sm:$0xff] %v621
        %s638 = sand.u32 %s92, 1
        %s639 = sand.u32 %s92, 1
        %s640 = smul.addr %s639, 128
        %s641 = scalar_lea.vmem [#allocation2], %s640
        %s642 = smul.u32 16, %s16
        %p643 = scmp.lt.s32.totalorder %s642, 31
        %s644 = scalar_select %p643, %s642, 31
        %s645 = smul.addr %s644, 2
        %s646 = smul.addr %s645, 4
        %s647 = scalar_lea.vmem %s4, %s646
        // Predicated region
        $region33: #{mixhop_forward.3} parent=31 // pred_check
          %p648 = pneg %p102
        $region34: #{mixhop_forward.3} parent=31 // pred_check_branch
          %650 = sbr.rel (%p648) target = $region36
        $region35: #{mixhop_forward.3} parent=31 // pred_region
          %s651 = smul.u32 16, %s16
          %s652 = smul.addr %s651, 3
          %s653 = smul.addr %s652, 8
          %s654 = scalar_lea.vmem %s3, %s653
          // Predicated region
          $region37: #{mixhop_forward.3} parent=35 // pred_check
            _
          $region38: #{mixhop_forward.3} parent=35 // pred_check_branch
            %656 = sbr.rel (0) target = $region40
          $region39: #{mixhop_forward.3} parent=35 // pred_region
            // Predicated region
            $region41: #{mixhop_forward.3} parent=39 // pred_check
              _
            $region42: #{mixhop_forward.3} parent=39 // pred_check_branch
              %658 = sbr.rel (0) target = $region44
            $region43: #{mixhop_forward.3} parent=39 // pred_region
              // Predicated region
              $region56: #{mixhop_forward.3} parent=43 // pred_check
                _
              $region57: #{mixhop_forward.3} parent=43 // pred_check_branch
                %704 = sbr.rel (0) target = $region59
              $region58: #{mixhop_forward.3} parent=43 // pred_region
                loop: start=0, step=1, limit=1
                $region60: #{mixhop_forward.3} parent=58 // loop_pre_header
                  _
                $region61: #{mixhop_forward.3} parent=58 // loop_header
                  %s706 = sphi 0, %s710
                  %p707 = scmp.ge.s32.totalorder %s706, 1
                  %s711 = sphi %s641, %s641
                  %s712 = sphi %s654, %s654
                $region62: #{mixhop_forward.3} parent=58 // loop_header_branch
                  %709 = sbr.rel (%p707) target = $region66
                $region63: #{mixhop_forward.3} parent=58 // loop_body
                  %v713 = vld [vmem:[%s711] sm:$0xff]
                  %714 = vst [vmem:[%s712] sm:$0xff] %v713
                  %v715 = vld [vmem:[%s711 + $0x8] sm:$0xff]
                  %716 = vst [vmem:[%s712 + $0x18] sm:$0xff] %v715
                  %v717 = vld [vmem:[%s711 + $0x10] sm:$0xff]
                  %718 = vst [vmem:[%s712 + $0x30] sm:$0xff] %v717
                  %v719 = vld [vmem:[%s711 + $0x18] sm:$0xff]
                  %720 = vst [vmem:[%s712 + $0x48] sm:$0xff] %v719
                  %v721 = vld [vmem:[%s711 + $0x20] sm:$0xff]
                  %722 = vst [vmem:[%s712 + $0x60] sm:$0xff] %v721
                  %v723 = vld [vmem:[%s711 + $0x28] sm:$0xff]
                  %724 = vst [vmem:[%s712 + $0x78] sm:$0xff] %v723
                  %v725 = vld [vmem:[%s711 + $0x30] sm:$0xff]
                  %726 = vst [vmem:[%s712 + $0x90] sm:$0xff] %v725
                  %v727 = vld [vmem:[%s711 + $0x38] sm:$0xff]
                  %728 = vst [vmem:[%s712 + $0xa8] sm:$0xff] %v727
                  %v729 = vld [vmem:[%s711 + $0x40] sm:$0xff]
                  %730 = vst [vmem:[%s712 + $0xc0] sm:$0xff] %v729
                  %v731 = vld [vmem:[%s711 + $0x48] sm:$0xff]
                  %732 = vst [vmem:[%s712 + $0xd8] sm:$0xff] %v731
                  %v733 = vld [vmem:[%s711 + $0x50] sm:$0xff]
                  %734 = vst [vmem:[%s712 + $0xf0] sm:$0xff] %v733
                  %v735 = vld [vmem:[%s711 + $0x58] sm:$0xff]
                  %736 = vst [vmem:[%s712 + $0x108] sm:$0xff] %v735
                  %v737 = vld [vmem:[%s711 + $0x60] sm:$0xff]
                  %738 = vst [vmem:[%s712 + $0x120] sm:$0xff] %v737
                  %v739 = vld [vmem:[%s711 + $0x68] sm:$0xff]
                  %740 = vst [vmem:[%s712 + $0x138] sm:$0xff] %v739
                  %v741 = vld [vmem:[%s711 + $0x70] sm:$0xff]
                  %742 = vst [vmem:[%s712 + $0x150] sm:$0xff] %v741
                  %v743 = vld [vmem:[%s711 + $0x78] sm:$0xff]
                  %744 = vst [vmem:[%s712 + $0x168] sm:$0xff] %v743
                $region64: #{mixhop_forward.3} parent=58 // loop_footer
                  %s710 = sadd.s32 1, %s706
                $region65: #{mixhop_forward.3} parent=58 // loop_footer_branch
                  %705 = sbr.rel target = $region61
                $region66: #{mixhop_forward.3} parent=58 // loop_exit
                  _
              $region59: #{mixhop_forward.3} parent=43 // pred_fallthru
                _
              // Predicated region
              $region67: #{mixhop_forward.3} parent=43 // pred_check
                _
              $region68: #{mixhop_forward.3} parent=43 // pred_check_branch
                %746 = sbr.rel target = $region70
              $region69: #{mixhop_forward.3} parent=43 // pred_region
                _
              $region70: #{mixhop_forward.3} parent=43 // pred_fallthru
                _
            $region44: #{mixhop_forward.3} parent=39 // pred_fallthru
              _
            // Predicated region
            $region45: #{mixhop_forward.3} parent=39 // pred_check
              _
            $region46: #{mixhop_forward.3} parent=39 // pred_check_branch
              %660 = sbr.rel target = $region48
            $region47: #{mixhop_forward.3} parent=39 // pred_region
              %s662 = ssub.s32 256, 1
              loop: start=0, step=1, limit=1
              $region49: #{mixhop_forward.3} parent=47 // loop_pre_header
                _
              $region50: #{mixhop_forward.3} parent=47 // loop_header
                %s664 = sphi 0, %s668
                %p665 = scmp.ge.s32.totalorder %s664, 1
                %s669 = sphi %s641, %s641
                %s670 = sphi %s654, %s654
              $region51: #{mixhop_forward.3} parent=47 // loop_header_branch
                %667 = sbr.rel (%p665) target = $region55
              $region52: #{mixhop_forward.3} parent=47 // loop_body
                %v671 = vld [vmem:[%s669] sm:%s662]
                %672 = vst [vmem:[%s670] sm:%s662] %v671
                %v673 = vld [vmem:[%s669 + $0x8] sm:%s662]
                %674 = vst [vmem:[%s670 + $0x18] sm:%s662] %v673
                %v675 = vld [vmem:[%s669 + $0x10] sm:%s662]
                %676 = vst [vmem:[%s670 + $0x30] sm:%s662] %v675
                %v677 = vld [vmem:[%s669 + $0x18] sm:%s662]
                %678 = vst [vmem:[%s670 + $0x48] sm:%s662] %v677
                %v679 = vld [vmem:[%s669 + $0x20] sm:%s662]
                %680 = vst [vmem:[%s670 + $0x60] sm:%s662] %v679
                %v681 = vld [vmem:[%s669 + $0x28] sm:%s662]
                %682 = vst [vmem:[%s670 + $0x78] sm:%s662] %v681
                %v683 = vld [vmem:[%s669 + $0x30] sm:%s662]
                %684 = vst [vmem:[%s670 + $0x90] sm:%s662] %v683
                %v685 = vld [vmem:[%s669 + $0x38] sm:%s662]
                %686 = vst [vmem:[%s670 + $0xa8] sm:%s662] %v685
                %v687 = vld [vmem:[%s669 + $0x40] sm:%s662]
                %688 = vst [vmem:[%s670 + $0xc0] sm:%s662] %v687
                %v689 = vld [vmem:[%s669 + $0x48] sm:%s662]
                %690 = vst [vmem:[%s670 + $0xd8] sm:%s662] %v689
                %v691 = vld [vmem:[%s669 + $0x50] sm:%s662]
                %692 = vst [vmem:[%s670 + $0xf0] sm:%s662] %v691
                %v693 = vld [vmem:[%s669 + $0x58] sm:%s662]
                %694 = vst [vmem:[%s670 + $0x108] sm:%s662] %v693
                %v695 = vld [vmem:[%s669 + $0x60] sm:%s662]
                %696 = vst [vmem:[%s670 + $0x120] sm:%s662] %v695
                %v697 = vld [vmem:[%s669 + $0x68] sm:%s662]
                %698 = vst [vmem:[%s670 + $0x138] sm:%s662] %v697
                %v699 = vld [vmem:[%s669 + $0x70] sm:%s662]
                %700 = vst [vmem:[%s670 + $0x150] sm:%s662] %v699
                %v701 = vld [vmem:[%s669 + $0x78] sm:%s662]
                %702 = vst [vmem:[%s670 + $0x168] sm:%s662] %v701
              $region53: #{mixhop_forward.3} parent=47 // loop_footer
                %s668 = sadd.s32 1, %s664
              $region54: #{mixhop_forward.3} parent=47 // loop_footer_branch
                %663 = sbr.rel target = $region50
              $region55: #{mixhop_forward.3} parent=47 // loop_exit
                _
            $region48: #{mixhop_forward.3} parent=39 // pred_fallthru
              _
          $region40: #{mixhop_forward.3} parent=35 // pred_fallthru
            _
          %747 = vnop
        $region36: #{mixhop_forward.3} parent=31 // pred_fallthru
          _
        // Predicated region
        $region71: #{mixhop_forward.3} parent=31 // pred_check
          %p748 = pneg %p128
        $region72: #{mixhop_forward.3} parent=31 // pred_check_branch
          %750 = sbr.rel (%p748) target = $region74
        $region73: #{mixhop_forward.3} parent=31 // pred_region
          %s751 = smul.u32 16, %s16
        $region74: #{mixhop_forward.3} parent=31 // pred_fallthru
          _
      $region32: #{mixhop_forward.3} parent=5 // pred_fallthru
        _
      %p752 = scmp.le.s32.totalorder 2, %s11
      // Predicated region
      $region75: #{mixhop_forward.3} parent=5 // pred_check
        %p753 = pneg %p752
      $region76: #{mixhop_forward.3} parent=5 // pred_check_branch
        %755 = sbr.rel (%p753) target = $region78
      $region77: #{mixhop_forward.3} parent=5 // pred_region
        %s756 = ssub.s32 %s11, 2
        // Predicated region
        $region79: #{mixhop_forward.3} parent=77 // pred_check
          %p757 = pneg %p108
        $region80: #{mixhop_forward.3} parent=77 // pred_check_branch
          %759 = sbr.rel (%p757) target = $region82
        $region81: #{mixhop_forward.3} parent=77 // pred_region
          %s760 = sand.u32 %s93, 1
          %s761 = sand.u32 %s93, 1
          %s762 = smul.addr %s761, 128
          %s763 = scalar_lea.vmem [#allocation2], %s762
        $region82: #{mixhop_forward.3} parent=77 // pred_fallthru
          _
        // Predicated region
        $region83: #{mixhop_forward.3} parent=77 // pred_check
          %p764 = pneg %p134
        $region84: #{mixhop_forward.3} parent=77 // pred_check_branch
          %766 = sbr.rel (%p764) target = $region86
        $region85: #{mixhop_forward.3} parent=77 // pred_region
          %s767 = smul.u32 16, %s17
          %p768 = scmp.lt.s32.totalorder %s767, 31
          %s769 = scalar_select %p768, %s767, 31
          %s770 = smul.addr %s769, 2
          %s771 = smul.addr %s770, 4
          %s772 = scalar_lea.vmem %s4, %s771
        $region86: #{mixhop_forward.3} parent=77 // pred_fallthru
          _
      $region78: #{mixhop_forward.3} parent=5 // pred_fallthru
        _
    $region6: #{mixhop_forward.3} parent=1 // loop_footer
      %s15 = sadd.s32 1, %s11
    $region7: #{mixhop_forward.3} parent=1 // loop_footer_branch
      %10 = sbr.rel target = $region3
    $region8: #{mixhop_forward.3} parent=1 // loop_exit
      _

// kernel: mixhop_forward.4
$region0: #{mixhop_forward.4}
  #allocation0 [shape = 'u32[]', space=smem, size = 0x4, offset = 0x4, fixed_abs, tag = 'smem constant byte address 0x4 - core index']
  #allocation1 [shape = 'u32[72,128]{1,0:T(1,128)}', space=vmem, size = 0x9000, scoped, tag = 'internal scratch']
  #allocation2 [shape = 'f32[128,256]{1,0:T(8,128)}', space=vmem, size = 0x20000, scoped, tag = 'scratch operand']
  %s0 = inlined_call_operand.vmem [shape: bf16[256,256], index: 0, kind: input, shape index: {}]
  %s1 = inlined_call_operand.vmem [shape: bf16[256,256], index: 1, kind: input, shape index: {}]
  %s2 = inlined_call_operand.vmem [shape: f32[256,384], index: 2, kind: input, shape index: {}, may-alias: {2,3}]
  %s3 = inlined_call_operand.vmem [shape: f32[256,384], index: 3, kind: output, shape index: {0}, may-alias: {2,3}]
  %s4 = inlined_call_operand.vmem [shape: bf16[256,128], index: 4, kind: output, shape index: {1}]
  %5 = xla_tuple %s3, %s4
  %s6 = sld [smem:[#allocation0]]
  $region91: #{mixhop_forward.4} parent=0
    _
  %s8 = ssub.s32 1, %s6
  %s9 = scalar_select 0, %s8, %s6
  $region1: #{mixhop_forward.4} parent=0
    #allocation3 [shape = 'u8[131072]{0}', space=vmem, size = 0x20000, scoped, tag = 'output window, operand 0']
    loop: start=0, step=1, limit=4
    $region2: #{mixhop_forward.4} parent=1 // loop_pre_header
      _
    $region3: #{mixhop_forward.4} parent=1 // loop_header
      %s11 = sphi 0, %s15
      %p12 = scmp.ge.s32.totalorder %s11, 4
      %s18 = sphi 0, %s30
      %s19 = sphi 0, %s26
      %s20 = sphi 0, %s18
      %s21 = sphi 0, %s19
      %s22 = sphi 0, %s20
      %s23 = sphi 0, %s21
      %s35 = sphi 0, %s37
      %s38 = sphi 0, %s35
      %s39 = sphi 0, %s38
      %s55 = sphi 0, %s39
      %s61 = sphi 0, %s63
      %s64 = sphi 0, %s61
      %s65 = sphi 0, %s64
      %s81 = sphi 0, %s65
      %s87 = sphi 0, %s89
      %s90 = sphi 0, %s87
      %s91 = sphi 0, %s90
      %s107 = sphi 0, %s91
      %s113 = sphi 0, %s115
      %s116 = sphi 0, %s113
      %s117 = sphi 0, %s116
      %s133 = sphi 0, %s117
    $region4: #{mixhop_forward.4} parent=1 // loop_header_branch
      %14 = sbr.rel (%p12) target = $region8
    $region5: #{mixhop_forward.4} parent=1 // loop_body
      %s16 = ssub.s32 %s11, 1
      %s17 = ssub.s32 %s11, 2
      %s24 = sadd.s32 1, %s19
      %p25 = scmp.ge.s32.totalorder %s24, 1
      %s26 = scalar_select %p25, 0, %s24
      %s27 = sadd.s32 1, %s18
      %s28 = scalar_select %p25, %s27, %s18
      %p29 = scmp.ge.s32.totalorder %s28, 2
      %s30 = scalar_select %p29, 0, %s28
      %s31 = ssub.s32 %s18, %s30
      %s32 = ssub.s32 %s19, %s26
      %s33 = sor.u32 %s31, %s32
      %p34 = scmp.eq.s32.totalorder %s33, 0
      %s36 = sadd.s32 %s35, 1
      %s37 = scalar_select %p34, %s35, %s36
      %p40 = pneg %p34
      %p41 = scmp.eq.s32.totalorder %s11, 1
      %p42 = por %p40, %p41
      %p43 = scmp.ne.s32.totalorder %s35, %s38
      %p44 = scmp.eq.s32.totalorder %s11, 0
      %p45 = por %p43, %p44
      %p46 = scmp.ne.s32.totalorder %s35, %s38
      %p47 = scmp.eq.s32.totalorder %s16, 1
      %p48 = por %p46, %p47
      %p49 = scmp.ne.s32.totalorder %s38, %s39
      %p50 = scmp.eq.s32.totalorder %s16, 0
      %p51 = por %p49, %p50
      %p52 = scmp.ne.s32.totalorder %s38, %s39
      %p53 = scmp.eq.s32.totalorder %s17, 1
      %p54 = por %p52, %p53
      %p56 = scmp.ne.s32.totalorder %s39, %s55
      %p57 = scmp.eq.s32.totalorder %s17, 0
      %p58 = por %p56, %p57
      %s59 = ssub.s32 %s19, %s26
      %p60 = scmp.eq.s32.totalorder %s59, 0
      %s62 = sadd.s32 %s61, 1
      %s63 = scalar_select %p60, %s61, %s62
      %p66 = pneg %p60
      %p67 = scmp.eq.s32.totalorder %s11, 1
      %p68 = por %p66, %p67
      %p69 = scmp.ne.s32.totalorder %s61, %s64
      %p70 = scmp.eq.s32.totalorder %s11, 0
      %p71 = por %p69, %p70
      %p72 = scmp.ne.s32.totalorder %s61, %s64
      %p73 = scmp.eq.s32.totalorder %s16, 1
      %p74 = por %p72, %p73
      %p75 = scmp.ne.s32.totalorder %s64, %s65
      %p76 = scmp.eq.s32.totalorder %s16, 0
      %p77 = por %p75, %p76
      %p78 = scmp.ne.s32.totalorder %s64, %s65
      %p79 = scmp.eq.s32.totalorder %s17, 1
      %p80 = por %p78, %p79
      %p82 = scmp.ne.s32.totalorder %s65, %s81
      %p83 = scmp.eq.s32.totalorder %s17, 0
      %p84 = por %p82, %p83
      %s85 = ssub.s32 %s18, %s30
      %p86 = scmp.eq.s32.totalorder %s85, 0
      %s88 = sadd.s32 %s87, 1
      %s89 = scalar_select %p86, %s87, %s88
      %p92 = pneg %p86
      %p93 = scmp.eq.s32.totalorder %s11, 1
      %p94 = por %p92, %p93
      %p95 = scmp.ne.s32.totalorder %s87, %s90
      %p96 = scmp.eq.s32.totalorder %s11, 0
      %p97 = por %p95, %p96
      %p98 = scmp.ne.s32.totalorder %s87, %s90
      %p99 = scmp.eq.s32.totalorder %s16, 1
      %p100 = por %p98, %p99
      %p101 = scmp.ne.s32.totalorder %s90, %s91
      %p102 = scmp.eq.s32.totalorder %s16, 0
      %p103 = por %p101, %p102
      %p104 = scmp.ne.s32.totalorder %s90, %s91
      %p105 = scmp.eq.s32.totalorder %s17, 1
      %p106 = por %p104, %p105
      %p108 = scmp.ne.s32.totalorder %s91, %s107
      %p109 = scmp.eq.s32.totalorder %s17, 0
      %p110 = por %p108, %p109
      %s111 = ssub.s32 %s18, %s30
      %p112 = scmp.eq.s32.totalorder %s111, 0
      %s114 = sadd.s32 %s113, 1
      %s115 = scalar_select %p112, %s113, %s114
      %p118 = pneg %p112
      %p119 = scmp.eq.s32.totalorder %s11, 1
      %p120 = por %p118, %p119
      %p121 = scmp.ne.s32.totalorder %s113, %s116
      %p122 = scmp.eq.s32.totalorder %s11, 0
      %p123 = por %p121, %p122
      %p124 = scmp.ne.s32.totalorder %s113, %s116
      %p125 = scmp.eq.s32.totalorder %s16, 1
      %p126 = por %p124, %p125
      %p127 = scmp.ne.s32.totalorder %s116, %s117
      %p128 = scmp.eq.s32.totalorder %s16, 0
      %p129 = por %p127, %p128
      %p130 = scmp.ne.s32.totalorder %s116, %s117
      %p131 = scmp.eq.s32.totalorder %s17, 1
      %p132 = por %p130, %p131
      %p134 = scmp.ne.s32.totalorder %s117, %s133
      %p135 = scmp.eq.s32.totalorder %s17, 0
      %p136 = por %p134, %p135
      %p137 = scmp.le.s32.totalorder 1, %s11
      %p138 = scmp.lt.s32.totalorder %s11, 3
      %p139 = pnand %p137, %p138
      %p140 = pneg %p139
      // Predicated region
      $region9: #{mixhop_forward.4} parent=5 // pred_check
        _
      $region10: #{mixhop_forward.4} parent=5 // pred_check_branch
        %142 = sbr.rel (%p139) target = $region12
      $region11: #{mixhop_forward.4} parent=5 // pred_region
        %s143 = ssub.s32 %s11, 1
        // Predicated region
        $region13: #{mixhop_forward.4} parent=11 // pred_check
          %p144 = pneg %p77
        $region14: #{mixhop_forward.4} parent=11 // pred_check_branch
          %146 = sbr.rel (%p144) target = $region16
        $region15: #{mixhop_forward.4} parent=11 // pred_region
          %s147 = smul.u32 32, %s21
          %p148 = scmp.lt.s32.totalorder %s147, 31
          %s149 = scalar_select %p148, %s147, 31
          %s150 = smul.addr %s149, 2
          %s151 = smul.addr %s150, 4
          %s152 = scalar_lea.vmem %s1, %s151
          %s153 = smul.u32 32, %s21
        $region16: #{mixhop_forward.4} parent=11 // pred_fallthru
          _
      $region12: #{mixhop_forward.4} parent=5 // pred_fallthru
        _
      %p154 = scmp.lt.s32.totalorder %s11, 2
      // Predicated region
      $region17: #{mixhop_forward.4} parent=5 // pred_check
        %p155 = pneg %p154
      $region18: #{mixhop_forward.4} parent=5 // pred_check_branch
        %157 = sbr.rel (%p155) target = $region20
      $region19: #{mixhop_forward.4} parent=5 // pred_region
        // Predicated region
        $region21: #{mixhop_forward.4} parent=19 // pred_check
          %p158 = pneg %p45
        $region22: #{mixhop_forward.4} parent=19 // pred_check_branch
          %160 = sbr.rel (%p158) target = $region24
        $region23: #{mixhop_forward.4} parent=19 // pred_region
          %s161 = smul.u32 16, %s18
          %s162 = smul.u32 2, %s19
          %p163 = scmp.lt.s32.totalorder %s161, 31
          %s164 = scalar_select %p163, %s161, 31
          %p165 = scmp.lt.s32.totalorder %s162, 1
          %s166 = scalar_select %p165, %s162, 1
          %s167 = smul.addr %s164, 2
          %s168 = sadd.s32 %s166, %s167
          %s169 = smul.addr %s168, 4
          %s170 = scalar_lea.vmem %s0, %s169
          %s171 = smul.u32 16, %s18
          %s172 = smul.u32 2, %s19
        $region24: #{mixhop_forward.4} parent=19 // pred_fallthru
          _
      $region20: #{mixhop_forward.4} parent=5 // pred_fallthru
        _
      %p173 = scmp.le.s32.totalorder 1, %s11
      %p174 = scmp.lt.s32.totalorder %s11, 3
      %p175 = pnand %p173, %p174
      %p176 = pneg %p175
      // Predicated region
      $region25: #{mixhop_forward.4} parent=5 // pred_check
        _
      $region26: #{mixhop_forward.4} parent=5 // pred_check_branch
        %178 = sbr.rel (%p175) target = $region28
      $region27: #{mixhop_forward.4} parent=5 // pred_region
        %s179 = ssub.s32 %s11, 1
        %s180 = smul.u32 16, %s20
        %s181 = smul.u32 2, %s21
        %p182 = scmp.lt.s32.totalorder %s180, 31
        %s183 = scalar_select %p182, %s180, 31
        %p184 = scmp.lt.s32.totalorder %s181, 1
        %s185 = scalar_select %p184, %s181, 1
        %s186 = smul.addr %s183, 2
        %s187 = sadd.s32 %s185, %s186
        %s188 = smul.addr %s187, 4
        %s189 = scalar_lea.vmem %s0, %s188
        %p190 = pneg %p51
        %p191 = pneg %p48
        %s192 = smul.u32 32, %s21
        %p193 = scmp.lt.s32.totalorder %s192, 31
        %s194 = scalar_select %p193, %s192, 31
        %s195 = smul.addr %s194, 2
        %s196 = smul.addr %s195, 4
        %s197 = scalar_lea.vmem %s1, %s196
        %p198 = pneg %p77
        %p199 = pneg %p74
        %p200 = pneg %p103
        %p201 = pneg %p100
        %s202 = sand.u32 %s90, 1
        %s203 = sand.u32 %s90, 1
        %s204 = smul.addr %s203, 128
        %s205 = scalar_lea.vmem [#allocation3], %s204
        %p206 = pneg %p129
        %p207 = pneg %p126
        %s208 = smul.u32 16, %s20
        %p209 = scmp.lt.s32.totalorder %s208, 31
        %s210 = scalar_select %p209, %s208, 31
        %s211 = smul.addr %s210, 4
        %s212 = scalar_lea.vmem %s4, %s211
        %s213 = smul.u32 16, %s20
        %s214 = smul.u32 2, %s21
        %p215 = scmp.lt.s32.totalorder %s213, 31
        %s216 = scalar_select %p215, %s213, 31
        %p217 = scmp.lt.s32.totalorder %s214, 1
        %s218 = scalar_select %p217, %s214, 1
        %s219 = smul.addr %s216, 2
        %s220 = sadd.s32 %s218, %s219
        %s221 = smul.addr %s220, 4
        %s222 = scalar_lea.vmem %s0, %s221
        %s223 = smul.u32 16, %s20
        %s224 = smul.u32 2, %s21
        %s225 = smul.u32 32, %s21
        %p226 = scmp.lt.s32.totalorder %s225, 31
        %s227 = scalar_select %p226, %s225, 31
        %s228 = smul.addr %s227, 2
        %s229 = smul.addr %s228, 4
        %s230 = scalar_lea.vmem %s1, %s229
        %s231 = smul.u32 32, %s21
        %s232 = smul.u32 16, %s20
        %s233 = smul.u32 16, %s20
        %p234 = scmp.lt.s32.totalorder %s233, 31
        %s235 = scalar_select %p234, %s233, 31
        %s236 = smul.addr %s235, 4
        %s237 = scalar_lea.vmem %s4, %s236
        %s238 = smul.u32 16, %s20
        %p239 = scmp.eq.s32.totalorder %s21, 0
        // Predicated region
        $region29: #{mixhop_forward.4} parent=27 // pred_check
          %p240 = pneg %p239
        $region30: #{mixhop_forward.4} parent=27 // pred_check_branch
          %242 = sbr.rel (%p240) target = $region32
        $region31: #{mixhop_forward.4} parent=27 // pred_region
          %243 = vst [vmem:[#allocation2] sm:$0xff] 0.0
          %244 = vst [vmem:[#allocation2 + $0x8] sm:$0xff] 0.0
          %245 = vst [vmem:[#allocation2 + $0x10] sm:$0xff] 0.0
          %246 = vst [vmem:[#allocation2 + $0x18] sm:$0xff] 0.0
          %247 = vst [vmem:[#allocation2 + $0x20] sm:$0xff] 0.0
          %248 = vst [vmem:[#allocation2 + $0x28] sm:$0xff] 0.0
          %249 = vst [vmem:[#allocation2 + $0x30] sm:$0xff] 0.0
          %250 = vst [vmem:[#allocation2 + $0x38] sm:$0xff] 0.0
          %251 = vst [vmem:[#allocation2 + $0x40] sm:$0xff] 0.0
          %252 = vst [vmem:[#allocation2 + $0x48] sm:$0xff] 0.0
          %253 = vst [vmem:[#allocation2 + $0x50] sm:$0xff] 0.0
          %254 = vst [vmem:[#allocation2 + $0x58] sm:$0xff] 0.0
          %255 = vst [vmem:[#allocation2 + $0x60] sm:$0xff] 0.0
          %256 = vst [vmem:[#allocation2 + $0x68] sm:$0xff] 0.0
          %257 = vst [vmem:[#allocation2 + $0x70] sm:$0xff] 0.0
          %258 = vst [vmem:[#allocation2 + $0x78] sm:$0xff] 0.0
          %259 = vst [vmem:[#allocation2 + $0x80] sm:$0xff] 0.0
          %260 = vst [vmem:[#allocation2 + $0x88] sm:$0xff] 0.0
          %261 = vst [vmem:[#allocation2 + $0x90] sm:$0xff] 0.0
          %262 = vst [vmem:[#allocation2 + $0x98] sm:$0xff] 0.0
          %263 = vst [vmem:[#allocation2 + $0xa0] sm:$0xff] 0.0
          %264 = vst [vmem:[#allocation2 + $0xa8] sm:$0xff] 0.0
          %265 = vst [vmem:[#allocation2 + $0xb0] sm:$0xff] 0.0
          %266 = vst [vmem:[#allocation2 + $0xb8] sm:$0xff] 0.0
          %267 = vst [vmem:[#allocation2 + $0xc0] sm:$0xff] 0.0
          %268 = vst [vmem:[#allocation2 + $0xc8] sm:$0xff] 0.0
          %269 = vst [vmem:[#allocation2 + $0xd0] sm:$0xff] 0.0
          %270 = vst [vmem:[#allocation2 + $0xd8] sm:$0xff] 0.0
          %271 = vst [vmem:[#allocation2 + $0xe0] sm:$0xff] 0.0
          %272 = vst [vmem:[#allocation2 + $0xe8] sm:$0xff] 0.0
          %273 = vst [vmem:[#allocation2 + $0xf0] sm:$0xff] 0.0
          %274 = vst [vmem:[#allocation2 + $0xf8] sm:$0xff] 0.0
        $region32: #{mixhop_forward.4} parent=27 // pred_fallthru
          _
        %v275 = vld [vmem:[#allocation2] sm:$0xff]
        %v276 = vld [vmem:[#allocation2 + $0x8] sm:$0xff]
        %v277 = vld [vmem:[#allocation2 + $0x10] sm:$0xff]
        %v278 = vld [vmem:[#allocation2 + $0x18] sm:$0xff]
        %v279 = vld [vmem:[#allocation2 + $0x20] sm:$0xff]
        %v280 = vld [vmem:[#allocation2 + $0x28] sm:$0xff]
        %v281 = vld [vmem:[#allocation2 + $0x30] sm:$0xff]
        %v282 = vld [vmem:[#allocation2 + $0x38] sm:$0xff]
        %v283 = vld [vmem:[#allocation2 + $0x40] sm:$0xff]
        %v284 = vld [vmem:[#allocation2 + $0x48] sm:$0xff]
        %v285 = vld [vmem:[#allocation2 + $0x50] sm:$0xff]
        %v286 = vld [vmem:[#allocation2 + $0x58] sm:$0xff]
        %v287 = vld [vmem:[#allocation2 + $0x60] sm:$0xff]
        %v288 = vld [vmem:[#allocation2 + $0x68] sm:$0xff]
        %v289 = vld [vmem:[#allocation2 + $0x70] sm:$0xff]
        %v290 = vld [vmem:[#allocation2 + $0x78] sm:$0xff]
        %v291 = vld [vmem:[#allocation2 + $0x80] sm:$0xff]
        %v292 = vld [vmem:[#allocation2 + $0x88] sm:$0xff]
        %v293 = vld [vmem:[#allocation2 + $0x90] sm:$0xff]
        %v294 = vld [vmem:[#allocation2 + $0x98] sm:$0xff]
        %v295 = vld [vmem:[#allocation2 + $0xa0] sm:$0xff]
        %v296 = vld [vmem:[#allocation2 + $0xa8] sm:$0xff]
        %v297 = vld [vmem:[#allocation2 + $0xb0] sm:$0xff]
        %v298 = vld [vmem:[#allocation2 + $0xb8] sm:$0xff]
        %v299 = vld [vmem:[#allocation2 + $0xc0] sm:$0xff]
        %v300 = vld [vmem:[#allocation2 + $0xc8] sm:$0xff]
        %v301 = vld [vmem:[#allocation2 + $0xd0] sm:$0xff]
        %v302 = vld [vmem:[#allocation2 + $0xd8] sm:$0xff]
        %v303 = vld [vmem:[#allocation2 + $0xe0] sm:$0xff]
        %v304 = vld [vmem:[#allocation2 + $0xe8] sm:$0xff]
        %v305 = vld [vmem:[#allocation2 + $0xf0] sm:$0xff]
        %v306 = vld [vmem:[#allocation2 + $0xf8] sm:$0xff]
        %v307 = vld [vmem:[%s222] sm:$0xff]
        %v308 = vld [vmem:[%s222 + $0x8] sm:$0xff]
        %v309 = vld [vmem:[%s222 + $0x10] sm:$0xff]
        %v310 = vld [vmem:[%s222 + $0x18] sm:$0xff]
        %v311 = vld [vmem:[%s222 + $0x20] sm:$0xff]
        %v312 = vld [vmem:[%s222 + $0x28] sm:$0xff]
        %v313 = vld [vmem:[%s222 + $0x30] sm:$0xff]
        %v314 = vld [vmem:[%s222 + $0x38] sm:$0xff]
        %v315 = vld [vmem:[%s222 + $0x40] sm:$0xff]
        %v316 = vld [vmem:[%s222 + $0x48] sm:$0xff]
        %v317 = vld [vmem:[%s222 + $0x50] sm:$0xff]
        %v318 = vld [vmem:[%s222 + $0x58] sm:$0xff]
        %v319 = vld [vmem:[%s222 + $0x60] sm:$0xff]
        %v320 = vld [vmem:[%s222 + $0x68] sm:$0xff]
        %v321 = vld [vmem:[%s222 + $0x70] sm:$0xff]
        %v322 = vld [vmem:[%s222 + $0x78] sm:$0xff]
        %v323 = vld [vmem:[%s230] sm:$0xff]
        %v324 = vld [vmem:[%s230 + $0x8] sm:$0xff]
        %v325 = vld [vmem:[%s230 + $0x10] sm:$0xff]
        %v326 = vld [vmem:[%s230 + $0x18] sm:$0xff]
        %v327 = vld [vmem:[%s230 + $0x20] sm:$0xff]
        %v328 = vld [vmem:[%s230 + $0x28] sm:$0xff]
        %v329 = vld [vmem:[%s230 + $0x30] sm:$0xff]
        %v330 = vld [vmem:[%s230 + $0x38] sm:$0xff]
        %v331 = vld [vmem:[%s230 + $0x40] sm:$0xff]
        %v332 = vld [vmem:[%s230 + $0x48] sm:$0xff]
        %v333 = vld [vmem:[%s230 + $0x50] sm:$0xff]
        %v334 = vld [vmem:[%s230 + $0x58] sm:$0xff]
        %v335 = vld [vmem:[%s230 + $0x60] sm:$0xff]
        %v336 = vld [vmem:[%s230 + $0x68] sm:$0xff]
        %v337 = vld [vmem:[%s230 + $0x70] sm:$0xff]
        %v338 = vld [vmem:[%s230 + $0x78] sm:$0xff]
        %v339 = vld [vmem:[%s230 + $0x80] sm:$0xff]
        %v340 = vld [vmem:[%s230 + $0x88] sm:$0xff]
        %v341 = vld [vmem:[%s230 + $0x90] sm:$0xff]
        %v342 = vld [vmem:[%s230 + $0x98] sm:$0xff]
        %v343 = vld [vmem:[%s230 + $0xa0] sm:$0xff]
        %v344 = vld [vmem:[%s230 + $0xa8] sm:$0xff]
        %v345 = vld [vmem:[%s230 + $0xb0] sm:$0xff]
        %v346 = vld [vmem:[%s230 + $0xb8] sm:$0xff]
        %v347 = vld [vmem:[%s230 + $0xc0] sm:$0xff]
        %v348 = vld [vmem:[%s230 + $0xc8] sm:$0xff]
        %v349 = vld [vmem:[%s230 + $0xd0] sm:$0xff]
        %v350 = vld [vmem:[%s230 + $0xd8] sm:$0xff]
        %v351 = vld [vmem:[%s230 + $0xe0] sm:$0xff]
        %v352 = vld [vmem:[%s230 + $0xe8] sm:$0xff]
        %v353 = vld [vmem:[%s230 + $0xf0] sm:$0xff]
        %v354 = vld [vmem:[%s230 + $0xf8] sm:$0xff]
        %v371 = vunpack.c.l.b16 %v307
        %v372 = vunpack.c.h.b16 %v307
        %v373 = vunpack.c.l.b16 %v308
        %v374 = vunpack.c.h.b16 %v308
        %v375 = vunpack.c.l.b16 %v309
        %v376 = vunpack.c.h.b16 %v309
        %v377 = vunpack.c.l.b16 %v310
        %v378 = vunpack.c.h.b16 %v310
        %v379 = vunpack.c.l.b16 %v311
        %v380 = vunpack.c.h.b16 %v311
        %v381 = vunpack.c.l.b16 %v312
        %v382 = vunpack.c.h.b16 %v312
        %v383 = vunpack.c.l.b16 %v313
        %v384 = vunpack.c.h.b16 %v313
        %v385 = vunpack.c.l.b16 %v314
        %v386 = vunpack.c.h.b16 %v314
        %v387 = vunpack.c.l.b16 %v315
        %v388 = vunpack.c.h.b16 %v315
        %v389 = vunpack.c.l.b16 %v316
        %v390 = vunpack.c.h.b16 %v316
        %v391 = vunpack.c.l.b16 %v317
        %v392 = vunpack.c.h.b16 %v317
        %v393 = vunpack.c.l.b16 %v318
        %v394 = vunpack.c.h.b16 %v318
        %v395 = vunpack.c.l.b16 %v319
        %v396 = vunpack.c.h.b16 %v319
        %v397 = vunpack.c.l.b16 %v320
        %v398 = vunpack.c.h.b16 %v320
        %v399 = vunpack.c.l.b16 %v321
        %v400 = vunpack.c.h.b16 %v321
        %v401 = vunpack.c.l.b16 %v322
        %v402 = vunpack.c.h.b16 %v322
        %v403 = vpack.c.b16 %v373, %v371
        %v404 = vpack.c.b16 %v374, %v372
        %v405 = vpack.c.b16 %v377, %v375
        %v406 = vpack.c.b16 %v378, %v376
        %v407 = vpack.c.b16 %v381, %v379
        %v408 = vpack.c.b16 %v382, %v380
        %v409 = vpack.c.b16 %v385, %v383
        %v410 = vpack.c.b16 %v386, %v384
        %v411 = vpack.c.b16 %v389, %v387
        %v412 = vpack.c.b16 %v390, %v388
        %v413 = vpack.c.b16 %v393, %v391
        %v414 = vpack.c.b16 %v394, %v392
        %v415 = vpack.c.b16 %v397, %v395
        %v416 = vpack.c.b16 %v398, %v396
        %v417 = vpack.c.b16 %v401, %v399
        %v418 = vpack.c.b16 %v402, %v400
        %v467 = vunpack.c.l.b16 %v323
        %v468 = vunpack.c.h.b16 %v323
        %v469 = vunpack.c.l.b16 %v324
        %v470 = vunpack.c.h.b16 %v324
        %v471 = vunpack.c.l.b16 %v325
        %v472 = vunpack.c.h.b16 %v325
        %v473 = vunpack.c.l.b16 %v326
        %v474 = vunpack.c.h.b16 %v326
        %v475 = vunpack.c.l.b16 %v327
        %v476 = vunpack.c.h.b16 %v327
        %v477 = vunpack.c.l.b16 %v328
        %v478 = vunpack.c.h.b16 %v328
        %v479 = vunpack.c.l.b16 %v329
        %v480 = vunpack.c.h.b16 %v329
        %v481 = vunpack.c.l.b16 %v330
        %v482 = vunpack.c.h.b16 %v330
        %v483 = vunpack.c.l.b16 %v331
        %v484 = vunpack.c.h.b16 %v331
        %v485 = vunpack.c.l.b16 %v332
        %v486 = vunpack.c.h.b16 %v332
        %v487 = vunpack.c.l.b16 %v333
        %v488 = vunpack.c.h.b16 %v333
        %v489 = vunpack.c.l.b16 %v334
        %v490 = vunpack.c.h.b16 %v334
        %v491 = vunpack.c.l.b16 %v335
        %v492 = vunpack.c.h.b16 %v335
        %v493 = vunpack.c.l.b16 %v336
        %v494 = vunpack.c.h.b16 %v336
        %v495 = vunpack.c.l.b16 %v337
        %v496 = vunpack.c.h.b16 %v337
        %v497 = vunpack.c.l.b16 %v338
        %v498 = vunpack.c.h.b16 %v338
        %v499 = vunpack.c.l.b16 %v339
        %v500 = vunpack.c.h.b16 %v339
        %v501 = vunpack.c.l.b16 %v340
        %v502 = vunpack.c.h.b16 %v340
        %v503 = vunpack.c.l.b16 %v341
        %v504 = vunpack.c.h.b16 %v341
        %v505 = vunpack.c.l.b16 %v342
        %v506 = vunpack.c.h.b16 %v342
        %v507 = vunpack.c.l.b16 %v343
        %v508 = vunpack.c.h.b16 %v343
        %v509 = vunpack.c.l.b16 %v344
        %v510 = vunpack.c.h.b16 %v344
        %v511 = vunpack.c.l.b16 %v345
        %v512 = vunpack.c.h.b16 %v345
        %v513 = vunpack.c.l.b16 %v346
        %v514 = vunpack.c.h.b16 %v346
        %v515 = vunpack.c.l.b16 %v347
        %v516 = vunpack.c.h.b16 %v347
        %v517 = vunpack.c.l.b16 %v348
        %v518 = vunpack.c.h.b16 %v348
        %v519 = vunpack.c.l.b16 %v349
        %v520 = vunpack.c.h.b16 %v349
        %v521 = vunpack.c.l.b16 %v350
        %v522 = vunpack.c.h.b16 %v350
        %v523 = vunpack.c.l.b16 %v351
        %v524 = vunpack.c.h.b16 %v351
        %v525 = vunpack.c.l.b16 %v352
        %v526 = vunpack.c.h.b16 %v352
        %v527 = vunpack.c.l.b16 %v353
        %v528 = vunpack.c.h.b16 %v353
        %v529 = vunpack.c.l.b16 %v354
        %v530 = vunpack.c.h.b16 %v354
        %v531 = vpack.c.b16 %v469, %v467
        %v532 = vpack.c.b16 %v470, %v468
        %v533 = vpack.c.b16 %v473, %v471
        %v534 = vpack.c.b16 %v474, %v472
        %v535 = vpack.c.b16 %v477, %v475
        %v536 = vpack.c.b16 %v478, %v476
        %v537 = vpack.c.b16 %v481, %v479
        %v538 = vpack.c.b16 %v482, %v480
        %v539 = vpack.c.b16 %v485, %v483
        %v540 = vpack.c.b16 %v486, %v484
        %v541 = vpack.c.b16 %v489, %v487
        %v542 = vpack.c.b16 %v490, %v488
        %v543 = vpack.c.b16 %v493, %v491
        %v544 = vpack.c.b16 %v494, %v492
        %v545 = vpack.c.b16 %v497, %v495
        %v546 = vpack.c.b16 %v498, %v496
        %v547 = vpack.c.b16 %v501, %v499
        %v548 = vpack.c.b16 %v502, %v500
        %v549 = vpack.c.b16 %v505, %v503
        %v550 = vpack.c.b16 %v506, %v504
        %v551 = vpack.c.b16 %v509, %v507
        %v552 = vpack.c.b16 %v510, %v508
        %v553 = vpack.c.b16 %v513, %v511
        %v554 = vpack.c.b16 %v514, %v512
        %v555 = vpack.c.b16 %v517, %v515
        %v556 = vpack.c.b16 %v518, %v516
        %v557 = vpack.c.b16 %v521, %v519
        %v558 = vpack.c.b16 %v522, %v520
        %v559 = vpack.c.b16 %v525, %v523
        %v560 = vpack.c.b16 %v526, %v524
        %v561 = vpack.c.b16 %v529, %v527
        %v562 = vpack.c.b16 %v530, %v528
        %595 = vmatpush.bf16.msra.mxu0 %v545
        %596 = vmatpush.bf16.msra.mxu0 %v543
        %597 = vmatpush.bf16.msra.mxu0 %v541
        %598 = vmatpush.bf16.msra.mxu0 %v539
        %599 = vmatpush.bf16.msra.mxu0 %v537
        %600 = vmatpush.bf16.msra.mxu0 %v535
        %601 = vmatpush.bf16.msra.mxu0 %v533
        %602 = vmatpush.bf16.msra.mxu0 %v531
        %603 = vmatmul.bf16.gmra.mxu0 %v403
        %v604 = vpop.f32.mrf.mxu0
        %v605 = vadd.f32 0.0, %v604
        %v606 = vpop.f32.mrf.mxu0
        %v607 = vadd.f32 0.0, %v606
        %608 = vmatmul.bf16.gmra.mxu0 %v405
        %v609 = vpop.f32.mrf.mxu0
        %v610 = vadd.f32 0.0, %v609
        %v611 = vpop.f32.mrf.mxu0
        %v612 = vadd.f32 0.0, %v611
        %613 = vmatmul.bf16.gmra.mxu0 %v407
        %v614 = vpop.f32.mrf.mxu0
        %v615 = vadd.f32 0.0, %v614
        %v616 = vpop.f32.mrf.mxu0
        %v617 = vadd.f32 0.0, %v616
        %618 = vmatmul.bf16.gmra.mxu0 %v409
        %v619 = vpop.f32.mrf.mxu0
        %v620 = vadd.f32 0.0, %v619
        %v621 = vpop.f32.mrf.mxu0
        %v622 = vadd.f32 0.0, %v621
        %623 = vmatmul.bf16.gmra.mxu0 %v411
        %v624 = vpop.f32.mrf.mxu0
        %v625 = vadd.f32 0.0, %v624
        %v626 = vpop.f32.mrf.mxu0
        %v627 = vadd.f32 0.0, %v626
        %628 = vmatmul.bf16.gmra.mxu0 %v413
        %v629 = vpop.f32.mrf.mxu0
        %v630 = vadd.f32 0.0, %v629
        %v631 = vpop.f32.mrf.mxu0
        %v632 = vadd.f32 0.0, %v631
        %633 = vmatmul.bf16.gmra.mxu0 %v415
        %v634 = vpop.f32.mrf.mxu0
        %v635 = vadd.f32 0.0, %v634
        %v636 = vpop.f32.mrf.mxu0
        %v637 = vadd.f32 0.0, %v636
        %638 = vmatmul.bf16.gmra.mxu0 %v417
        %v639 = vpop.f32.mrf.mxu0
        %v640 = vadd.f32 0.0, %v639
        %v641 = vpop.f32.mrf.mxu0
        %v642 = vadd.f32 0.0, %v641
        %643 = vdwg.mxu0
        %644 = vmatpush.bf16.msra.mxu0 %v561
        %645 = vmatpush.bf16.msra.mxu0 %v559
        %646 = vmatpush.bf16.msra.mxu0 %v557
        %647 = vmatpush.bf16.msra.mxu0 %v555
        %648 = vmatpush.bf16.msra.mxu0 %v553
        %649 = vmatpush.bf16.msra.mxu0 %v551
        %650 = vmatpush.bf16.msra.mxu0 %v549
        %651 = vmatpush.bf16.msra.mxu0 %v547
        %652 = vmatmul.bf16.gmra.mxu0 %v404
        %v653 = vpop.f32.mrf.mxu0
        %v654 = vadd.f32 %v605, %v653
        %v655 = vpop.f32.mrf.mxu0
        %v656 = vadd.f32 %v607, %v655
        %657 = vmatmul.bf16.gmra.mxu0 %v406
        %v658 = vpop.f32.mrf.mxu0
        %v659 = vadd.f32 %v610, %v658
        %v660 = vpop.f32.mrf.mxu0
        %v661 = vadd.f32 %v612, %v660
        %662 = vmatmul.bf16.gmra.mxu0 %v408
        %v663 = vpop.f32.mrf.mxu0
        %v664 = vadd.f32 %v615, %v663
        %v665 = vpop.f32.mrf.mxu0
        %v666 = vadd.f32 %v617, %v665
        %667 = vmatmul.bf16.gmra.mxu0 %v410
        %v668 = vpop.f32.mrf.mxu0
        %v669 = vadd.f32 %v620, %v668
        %v670 = vpop.f32.mrf.mxu0
        %v671 = vadd.f32 %v622, %v670
        %672 = vmatmul.bf16.gmra.mxu0 %v412
        %v673 = vpop.f32.mrf.mxu0
        %v674 = vadd.f32 %v625, %v673
        %v675 = vpop.f32.mrf.mxu0
        %v676 = vadd.f32 %v627, %v675
        %677 = vmatmul.bf16.gmra.mxu0 %v414
        %v678 = vpop.f32.mrf.mxu0
        %v679 = vadd.f32 %v630, %v678
        %v680 = vpop.f32.mrf.mxu0
        %v681 = vadd.f32 %v632, %v680
        %682 = vmatmul.bf16.gmra.mxu0 %v416
        %v683 = vpop.f32.mrf.mxu0
        %v684 = vadd.f32 %v635, %v683
        %v685 = vpop.f32.mrf.mxu0
        %v686 = vadd.f32 %v637, %v685
        %687 = vmatmul.bf16.gmra.mxu0 %v418
        %v688 = vpop.f32.mrf.mxu0
        %v689 = vadd.f32 %v640, %v688
        %v690 = vpop.f32.mrf.mxu0
        %v691 = vadd.f32 %v642, %v690
        %692 = vdwg.mxu0
        %693 = vmatpush.bf16.msra.mxu0 %v546
        %694 = vmatpush.bf16.msra.mxu0 %v544
        %695 = vmatpush.bf16.msra.mxu0 %v542
        %696 = vmatpush.bf16.msra.mxu0 %v540
        %697 = vmatpush.bf16.msra.mxu0 %v538
        %698 = vmatpush.bf16.msra.mxu0 %v536
        %699 = vmatpush.bf16.msra.mxu0 %v534
        %700 = vmatpush.bf16.msra.mxu0 %v532
        %701 = vmatmul.bf16.gmra.mxu0 %v403
        %v702 = vpop.f32.mrf.mxu0
        %v703 = vadd.f32 0.0, %v702
        %v704 = vpop.f32.mrf.mxu0
        %v705 = vadd.f32 0.0, %v704
        %706 = vmatmul.bf16.gmra.mxu0 %v405
        %v707 = vpop.f32.mrf.mxu0
        %v708 = vadd.f32 0.0, %v707
        %v709 = vpop.f32.mrf.mxu0
        %v710 = vadd.f32 0.0, %v709
        %711 = vmatmul.bf16.gmra.mxu0 %v407
        %v712 = vpop.f32.mrf.mxu0
        %v713 = vadd.f32 0.0, %v712
        %v714 = vpop.f32.mrf.mxu0
        %v715 = vadd.f32 0.0, %v714
        %716 = vmatmul.bf16.gmra.mxu0 %v409
        %v717 = vpop.f32.mrf.mxu0
        %v718 = vadd.f32 0.0, %v717
        %v719 = vpop.f32.mrf.mxu0
        %v720 = vadd.f32 0.0, %v719
        %721 = vmatmul.bf16.gmra.mxu0 %v411
        %v722 = vpop.f32.mrf.mxu0
        %v723 = vadd.f32 0.0, %v722
        %v724 = vpop.f32.mrf.mxu0
        %v725 = vadd.f32 0.0, %v724
        %726 = vmatmul.bf16.gmra.mxu0 %v413
        %v727 = vpop.f32.mrf.mxu0
        %v728 = vadd.f32 0.0, %v727
        %v729 = vpop.f32.mrf.mxu0
        %v730 = vadd.f32 0.0, %v729
        %731 = vmatmul.bf16.gmra.mxu0 %v415
        %v732 = vpop.f32.mrf.mxu0
        %v733 = vadd.f32 0.0, %v732
        %v734 = vpop.f32.mrf.mxu0
        %v735 = vadd.f32 0.0, %v734
        %736 = vmatmul.bf16.gmra.mxu0 %v417
        %v737 = vpop.f32.mrf.mxu0
        %v738 = vadd.f32 0.0, %v737
        %v739 = vpop.f32.mrf.mxu0
        %v740 = vadd.f32 0.0, %v739
        %741 = vdwg.mxu0
        %742 = vmatpush.bf16.msra.mxu0 %v562
        %743 = vmatpush.bf16.msra.mxu0 %v560
        %744 = vmatpush.bf16.msra.mxu0 %v558
        %745 = vmatpush.bf16.msra.mxu0 %v556
        %746 = vmatpush.bf16.msra.mxu0 %v554
        %747 = vmatpush.bf16.msra.mxu0 %v552
        %748 = vmatpush.bf16.msra.mxu0 %v550
        %749 = vmatpush.bf16.msra.mxu0 %v548
        %750 = vmatmul.bf16.gmra.mxu0 %v404
        %v751 = vpop.f32.mrf.mxu0
        %v752 = vadd.f32 %v703, %v751
        %v753 = vpop.f32.mrf.mxu0
        %v754 = vadd.f32 %v705, %v753
        %755 = vmatmul.bf16.gmra.mxu0 %v406
        %v756 = vpop.f32.mrf.mxu0
        %v757 = vadd.f32 %v708, %v756
        %v758 = vpop.f32.mrf.mxu0
        %v759 = vadd.f32 %v710, %v758
        %760 = vmatmul.bf16.gmra.mxu0 %v408
        %v761 = vpop.f32.mrf.mxu0
        %v762 = vadd.f32 %v713, %v761
        %v763 = vpop.f32.mrf.mxu0
        %v764 = vadd.f32 %v715, %v763
        %765 = vmatmul.bf16.gmra.mxu0 %v410
        %v766 = vpop.f32.mrf.mxu0
        %v767 = vadd.f32 %v718, %v766
        %v768 = vpop.f32.mrf.mxu0
        %v769 = vadd.f32 %v720, %v768
        %770 = vmatmul.bf16.gmra.mxu0 %v412
        %v771 = vpop.f32.mrf.mxu0
        %v772 = vadd.f32 %v723, %v771
        %v773 = vpop.f32.mrf.mxu0
        %v774 = vadd.f32 %v725, %v773
        %775 = vmatmul.bf16.gmra.mxu0 %v414
        %v776 = vpop.f32.mrf.mxu0
        %v777 = vadd.f32 %v728, %v776
        %v778 = vpop.f32.mrf.mxu0
        %v779 = vadd.f32 %v730, %v778
        %780 = vmatmul.bf16.gmra.mxu0 %v416
        %v781 = vpop.f32.mrf.mxu0
        %v782 = vadd.f32 %v733, %v781
        %v783 = vpop.f32.mrf.mxu0
        %v784 = vadd.f32 %v735, %v783
        %785 = vmatmul.bf16.gmra.mxu0 %v418
        %v786 = vpop.f32.mrf.mxu0
        %v787 = vadd.f32 %v738, %v786
        %v788 = vpop.f32.mrf.mxu0
        %v789 = vadd.f32 %v740, %v788
        %790 = vdwg.mxu0
        %v791 = vadd.f32 %v275, %v654
        %v792 = vadd.f32 %v276, %v752
        %v793 = vadd.f32 %v277, %v656
        %v794 = vadd.f32 %v278, %v754
        %v795 = vadd.f32 %v279, %v659
        %v796 = vadd.f32 %v280, %v757
        %v797 = vadd.f32 %v281, %v661
        %v798 = vadd.f32 %v282, %v759
        %v799 = vadd.f32 %v283, %v664
        %v800 = vadd.f32 %v284, %v762
        %v801 = vadd.f32 %v285, %v666
        %v802 = vadd.f32 %v286, %v764
        %v803 = vadd.f32 %v287, %v669
        %v804 = vadd.f32 %v288, %v767
        %v805 = vadd.f32 %v289, %v671
        %v806 = vadd.f32 %v290, %v769
        %v807 = vadd.f32 %v291, %v674
        %v808 = vadd.f32 %v292, %v772
        %v809 = vadd.f32 %v293, %v676
        %v810 = vadd.f32 %v294, %v774
        %v811 = vadd.f32 %v295, %v679
        %v812 = vadd.f32 %v296, %v777
        %v813 = vadd.f32 %v297, %v681
        %v814 = vadd.f32 %v298, %v779
        %v815 = vadd.f32 %v299, %v684
        %v816 = vadd.f32 %v300, %v782
        %v817 = vadd.f32 %v301, %v686
        %v818 = vadd.f32 %v302, %v784
        %v819 = vadd.f32 %v303, %v689
        %v820 = vadd.f32 %v304, %v787
        %v821 = vadd.f32 %v305, %v691
        %v822 = vadd.f32 %v306, %v789
        %823 = vst [vmem:[#allocation2] sm:$0xff] %v791
        %824 = vst [vmem:[#allocation2 + $0x8] sm:$0xff] %v792
        %825 = vst [vmem:[#allocation2 + $0x10] sm:$0xff] %v793
        %826 = vst [vmem:[#allocation2 + $0x18] sm:$0xff] %v794
        %827 = vst [vmem:[#allocation2 + $0x20] sm:$0xff] %v795
        %828 = vst [vmem:[#allocation2 + $0x28] sm:$0xff] %v796
        %829 = vst [vmem:[#allocation2 + $0x30] sm:$0xff] %v797
        %830 = vst [vmem:[#allocation2 + $0x38] sm:$0xff] %v798
        %831 = vst [vmem:[#allocation2 + $0x40] sm:$0xff] %v799
        %832 = vst [vmem:[#allocation2 + $0x48] sm:$0xff] %v800
        %833 = vst [vmem:[#allocation2 + $0x50] sm:$0xff] %v801
        %834 = vst [vmem:[#allocation2 + $0x58] sm:$0xff] %v802
        %835 = vst [vmem:[#allocation2 + $0x60] sm:$0xff] %v803
        %836 = vst [vmem:[#allocation2 + $0x68] sm:$0xff] %v804
        %837 = vst [vmem:[#allocation2 + $0x70] sm:$0xff] %v805
        %838 = vst [vmem:[#allocation2 + $0x78] sm:$0xff] %v806
        %839 = vst [vmem:[#allocation2 + $0x80] sm:$0xff] %v807
        %840 = vst [vmem:[#allocation2 + $0x88] sm:$0xff] %v808
        %841 = vst [vmem:[#allocation2 + $0x90] sm:$0xff] %v809
        %842 = vst [vmem:[#allocation2 + $0x98] sm:$0xff] %v810
        %843 = vst [vmem:[#allocation2 + $0xa0] sm:$0xff] %v811
        %844 = vst [vmem:[#allocation2 + $0xa8] sm:$0xff] %v812
        %845 = vst [vmem:[#allocation2 + $0xb0] sm:$0xff] %v813
        %846 = vst [vmem:[#allocation2 + $0xb8] sm:$0xff] %v814
        %847 = vst [vmem:[#allocation2 + $0xc0] sm:$0xff] %v815
        %848 = vst [vmem:[#allocation2 + $0xc8] sm:$0xff] %v816
        %849 = vst [vmem:[#allocation2 + $0xd0] sm:$0xff] %v817
        %850 = vst [vmem:[#allocation2 + $0xd8] sm:$0xff] %v818
        %851 = vst [vmem:[#allocation2 + $0xe0] sm:$0xff] %v819
        %852 = vst [vmem:[#allocation2 + $0xe8] sm:$0xff] %v820
        %853 = vst [vmem:[#allocation2 + $0xf0] sm:$0xff] %v821
        %854 = vst [vmem:[#allocation2 + $0xf8] sm:$0xff] %v822
        // Predicated region
        $region33: #{mixhop_forward.4} parent=27 // pred_check
          %p855 = pneg %p239
        $region34: #{mixhop_forward.4} parent=27 // pred_check_branch
          %857 = sbr.rel (%p855) target = $region36
        $region35: #{mixhop_forward.4} parent=27 // pred_region
          %v858 = vld [vmem:[#allocation2] sm:$0xff]
          %v859 = vld [vmem:[#allocation2 + $0x10] sm:$0xff]
          %v860 = vld [vmem:[#allocation2 + $0x20] sm:$0xff]
          %v861 = vld [vmem:[#allocation2 + $0x30] sm:$0xff]
          %v862 = vld [vmem:[#allocation2 + $0x40] sm:$0xff]
          %v863 = vld [vmem:[#allocation2 + $0x50] sm:$0xff]
          %v864 = vld [vmem:[#allocation2 + $0x60] sm:$0xff]
          %v865 = vld [vmem:[#allocation2 + $0x70] sm:$0xff]
          %v866 = vld [vmem:[#allocation2 + $0x80] sm:$0xff]
          %v867 = vld [vmem:[#allocation2 + $0x90] sm:$0xff]
          %v868 = vld [vmem:[#allocation2 + $0xa0] sm:$0xff]
          %v869 = vld [vmem:[#allocation2 + $0xb0] sm:$0xff]
          %v870 = vld [vmem:[#allocation2 + $0xc0] sm:$0xff]
          %v871 = vld [vmem:[#allocation2 + $0xd0] sm:$0xff]
          %v872 = vld [vmem:[#allocation2 + $0xe0] sm:$0xff]
          %v873 = vld [vmem:[#allocation2 + $0xf0] sm:$0xff]
          %874 = vst [vmem:[%s205] sm:$0xff] %v858
          %875 = vst [vmem:[%s205 + $0x8] sm:$0xff] %v859
          %876 = vst [vmem:[%s205 + $0x10] sm:$0xff] %v860
          %877 = vst [vmem:[%s205 + $0x18] sm:$0xff] %v861
          %878 = vst [vmem:[%s205 + $0x20] sm:$0xff] %v862
          %879 = vst [vmem:[%s205 + $0x28] sm:$0xff] %v863
          %880 = vst [vmem:[%s205 + $0x30] sm:$0xff] %v864
          %881 = vst [vmem:[%s205 + $0x38] sm:$0xff] %v865
          %882 = vst [vmem:[%s205 + $0x40] sm:$0xff] %v866
          %883 = vst [vmem:[%s205 + $0x48] sm:$0xff] %v867
          %884 = vst [vmem:[%s205 + $0x50] sm:$0xff] %v868
          %885 = vst [vmem:[%s205 + $0x58] sm:$0xff] %v869
          %886 = vst [vmem:[%s205 + $0x60] sm:$0xff] %v870
          %887 = vst [vmem:[%s205 + $0x68] sm:$0xff] %v871
          %888 = vst [vmem:[%s205 + $0x70] sm:$0xff] %v872
          %889 = vst [vmem:[%s205 + $0x78] sm:$0xff] %v873
          %v890 = vld [vmem:[#allocation2 + $0x8] sm:$0xff]
          %v891 = vld [vmem:[#allocation2 + $0x18] sm:$0xff]
          %v892 = vld [vmem:[#allocation2 + $0x28] sm:$0xff]
          %v893 = vld [vmem:[#allocation2 + $0x38] sm:$0xff]
          %v894 = vld [vmem:[#allocation2 + $0x48] sm:$0xff]
          %v895 = vld [vmem:[#allocation2 + $0x58] sm:$0xff]
          %v896 = vld [vmem:[#allocation2 + $0x68] sm:$0xff]
          %v897 = vld [vmem:[#allocation2 + $0x78] sm:$0xff]
          %v898 = vld [vmem:[#allocation2 + $0x88] sm:$0xff]
          %v899 = vld [vmem:[#allocation2 + $0x98] sm:$0xff]
          %v900 = vld [vmem:[#allocation2 + $0xa8] sm:$0xff]
          %v901 = vld [vmem:[#allocation2 + $0xb8] sm:$0xff]
          %v902 = vld [vmem:[#allocation2 + $0xc8] sm:$0xff]
          %v903 = vld [vmem:[#allocation2 + $0xd8] sm:$0xff]
          %v904 = vld [vmem:[#allocation2 + $0xe8] sm:$0xff]
          %v905 = vld [vmem:[#allocation2 + $0xf8] sm:$0xff]
          %v906 = vpack.c.bf16 %v890, %v890
          %v907 = vpack.c.bf16 %v891, %v891
          %v908 = vpack.c.bf16 %v892, %v892
          %v909 = vpack.c.bf16 %v893, %v893
          %v910 = vpack.c.bf16 %v894, %v894
          %v911 = vpack.c.bf16 %v895, %v895
          %v912 = vpack.c.bf16 %v896, %v896
          %v913 = vpack.c.bf16 %v897, %v897
          %v914 = vpack.c.bf16 %v898, %v898
          %v915 = vpack.c.bf16 %v899, %v899
          %v916 = vpack.c.bf16 %v900, %v900
          %v917 = vpack.c.bf16 %v901, %v901
          %v918 = vpack.c.bf16 %v902, %v902
          %v919 = vpack.c.bf16 %v903, %v903
          %v920 = vpack.c.bf16 %v904, %v904
          %v921 = vpack.c.bf16 %v905, %v905
          %922 = vst [vmem:[%s237] sm:$0xf] %v906
          %923 = vst [vmem:[%s237 + $0x4] sm:$0xf] %v907
          %924 = vst [vmem:[%s237 + $0x8] sm:$0xf] %v908
          %925 = vst [vmem:[%s237 + $0xc] sm:$0xf] %v909
          %926 = vst [vmem:[%s237 + $0x10] sm:$0xf] %v910
          %927 = vst [vmem:[%s237 + $0x14] sm:$0xf] %v911
          %928 = vst [vmem:[%s237 + $0x18] sm:$0xf] %v912
          %929 = vst [vmem:[%s237 + $0x1c] sm:$0xf] %v913
          %930 = vst [vmem:[%s237 + $0x20] sm:$0xf] %v914
          %931 = vst [vmem:[%s237 + $0x24] sm:$0xf] %v915
          %932 = vst [vmem:[%s237 + $0x28] sm:$0xf] %v916
          %933 = vst [vmem:[%s237 + $0x2c] sm:$0xf] %v917
          %934 = vst [vmem:[%s237 + $0x30] sm:$0xf] %v918
          %935 = vst [vmem:[%s237 + $0x34] sm:$0xf] %v919
          %936 = vst [vmem:[%s237 + $0x38] sm:$0xf] %v920
          %937 = vst [vmem:[%s237 + $0x3c] sm:$0xf] %v921
        $region36: #{mixhop_forward.4} parent=27 // pred_fallthru
          _
        %s938 = sand.u32 %s90, 1
        %s939 = sand.u32 %s90, 1
        %s940 = smul.addr %s939, 128
        %s941 = scalar_lea.vmem [#allocation3], %s940
        %s942 = smul.u32 16, %s20
        %p943 = scmp.lt.s32.totalorder %s942, 31
        %s944 = scalar_select %p943, %s942, 31
        %s945 = smul.addr %s944, 4
        %s946 = scalar_lea.vmem %s4, %s945
        // Predicated region
        $region37: #{mixhop_forward.4} parent=27 // pred_check
          %p947 = pneg %p100
        $region38: #{mixhop_forward.4} parent=27 // pred_check_branch
          %949 = sbr.rel (%p947) target = $region40
        $region39: #{mixhop_forward.4} parent=27 // pred_region
          %s950 = smul.u32 16, %s20
          %s951 = smul.addr %s950, 3
          %s952 = sadd.s32 1, %s951
          %s953 = smul.addr %s952, 8
          %s954 = scalar_lea.vmem %s3, %s953
          // Predicated region
          $region41: #{mixhop_forward.4} parent=39 // pred_check
            _
          $region42: #{mixhop_forward.4} parent=39 // pred_check_branch
            %956 = sbr.rel (0) target = $region44
          $region43: #{mixhop_forward.4} parent=39 // pred_region
            // Predicated region
            $region45: #{mixhop_forward.4} parent=43 // pred_check
              _
            $region46: #{mixhop_forward.4} parent=43 // pred_check_branch
              %958 = sbr.rel (0) target = $region48
            $region47: #{mixhop_forward.4} parent=43 // pred_region
              // Predicated region
              $region60: #{mixhop_forward.4} parent=47 // pred_check
                _
              $region61: #{mixhop_forward.4} parent=47 // pred_check_branch
                %1004 = sbr.rel (0) target = $region63
              $region62: #{mixhop_forward.4} parent=47 // pred_region
                loop: start=0, step=1, limit=1
                $region64: #{mixhop_forward.4} parent=62 // loop_pre_header
                  _
                $region65: #{mixhop_forward.4} parent=62 // loop_header
                  %s1006 = sphi 0, %s1010
                  %p1007 = scmp.ge.s32.totalorder %s1006, 1
                  %s1011 = sphi %s941, %s941
                  %s1012 = sphi %s954, %s954
                $region66: #{mixhop_forward.4} parent=62 // loop_header_branch
                  %1009 = sbr.rel (%p1007) target = $region70
                $region67: #{mixhop_forward.4} parent=62 // loop_body
                  %v1013 = vld [vmem:[%s1011] sm:$0xff]
                  %1014 = vst [vmem:[%s1012] sm:$0xff] %v1013
                  %v1015 = vld [vmem:[%s1011 + $0x8] sm:$0xff]
                  %1016 = vst [vmem:[%s1012 + $0x18] sm:$0xff] %v1015
                  %v1017 = vld [vmem:[%s1011 + $0x10] sm:$0xff]
                  %1018 = vst [vmem:[%s1012 + $0x30] sm:$0xff] %v1017
                  %v1019 = vld [vmem:[%s1011 + $0x18] sm:$0xff]
                  %1020 = vst [vmem:[%s1012 + $0x48] sm:$0xff] %v1019
                  %v1021 = vld [vmem:[%s1011 + $0x20] sm:$0xff]
                  %1022 = vst [vmem:[%s1012 + $0x60] sm:$0xff] %v1021
                  %v1023 = vld [vmem:[%s1011 + $0x28] sm:$0xff]
                  %1024 = vst [vmem:[%s1012 + $0x78] sm:$0xff] %v1023
                  %v1025 = vld [vmem:[%s1011 + $0x30] sm:$0xff]
                  %1026 = vst [vmem:[%s1012 + $0x90] sm:$0xff] %v1025
                  %v1027 = vld [vmem:[%s1011 + $0x38] sm:$0xff]
                  %1028 = vst [vmem:[%s1012 + $0xa8] sm:$0xff] %v1027
                  %v1029 = vld [vmem:[%s1011 + $0x40] sm:$0xff]
                  %1030 = vst [vmem:[%s1012 + $0xc0] sm:$0xff] %v1029
                  %v1031 = vld [vmem:[%s1011 + $0x48] sm:$0xff]
                  %1032 = vst [vmem:[%s1012 + $0xd8] sm:$0xff] %v1031
                  %v1033 = vld [vmem:[%s1011 + $0x50] sm:$0xff]
                  %1034 = vst [vmem:[%s1012 + $0xf0] sm:$0xff] %v1033
                  %v1035 = vld [vmem:[%s1011 + $0x58] sm:$0xff]
                  %1036 = vst [vmem:[%s1012 + $0x108] sm:$0xff] %v1035
                  %v1037 = vld [vmem:[%s1011 + $0x60] sm:$0xff]
                  %1038 = vst [vmem:[%s1012 + $0x120] sm:$0xff] %v1037
                  %v1039 = vld [vmem:[%s1011 + $0x68] sm:$0xff]
                  %1040 = vst [vmem:[%s1012 + $0x138] sm:$0xff] %v1039
                  %v1041 = vld [vmem:[%s1011 + $0x70] sm:$0xff]
                  %1042 = vst [vmem:[%s1012 + $0x150] sm:$0xff] %v1041
                  %v1043 = vld [vmem:[%s1011 + $0x78] sm:$0xff]
                  %1044 = vst [vmem:[%s1012 + $0x168] sm:$0xff] %v1043
                $region68: #{mixhop_forward.4} parent=62 // loop_footer
                  %s1010 = sadd.s32 1, %s1006
                $region69: #{mixhop_forward.4} parent=62 // loop_footer_branch
                  %1005 = sbr.rel target = $region65
                $region70: #{mixhop_forward.4} parent=62 // loop_exit
                  _
              $region63: #{mixhop_forward.4} parent=47 // pred_fallthru
                _
              // Predicated region
              $region71: #{mixhop_forward.4} parent=47 // pred_check
                _
              $region72: #{mixhop_forward.4} parent=47 // pred_check_branch
                %1046 = sbr.rel target = $region74
              $region73: #{mixhop_forward.4} parent=47 // pred_region
                _
              $region74: #{mixhop_forward.4} parent=47 // pred_fallthru
                _
            $region48: #{mixhop_forward.4} parent=43 // pred_fallthru
              _
            // Predicated region
            $region49: #{mixhop_forward.4} parent=43 // pred_check
              _
            $region50: #{mixhop_forward.4} parent=43 // pred_check_branch
              %960 = sbr.rel target = $region52
            $region51: #{mixhop_forward.4} parent=43 // pred_region
              %s962 = ssub.s32 256, 1
              loop: start=0, step=1, limit=1
              $region53: #{mixhop_forward.4} parent=51 // loop_pre_header
                _
              $region54: #{mixhop_forward.4} parent=51 // loop_header
                %s964 = sphi 0, %s968
                %p965 = scmp.ge.s32.totalorder %s964, 1
                %s969 = sphi %s941, %s941
                %s970 = sphi %s954, %s954
              $region55: #{mixhop_forward.4} parent=51 // loop_header_branch
                %967 = sbr.rel (%p965) target = $region59
              $region56: #{mixhop_forward.4} parent=51 // loop_body
                %v971 = vld [vmem:[%s969] sm:%s962]
                %972 = vst [vmem:[%s970] sm:%s962] %v971
                %v973 = vld [vmem:[%s969 + $0x8] sm:%s962]
                %974 = vst [vmem:[%s970 + $0x18] sm:%s962] %v973
                %v975 = vld [vmem:[%s969 + $0x10] sm:%s962]
                %976 = vst [vmem:[%s970 + $0x30] sm:%s962] %v975
                %v977 = vld [vmem:[%s969 + $0x18] sm:%s962]
                %978 = vst [vmem:[%s970 + $0x48] sm:%s962] %v977
                %v979 = vld [vmem:[%s969 + $0x20] sm:%s962]
                %980 = vst [vmem:[%s970 + $0x60] sm:%s962] %v979
                %v981 = vld [vmem:[%s969 + $0x28] sm:%s962]
                %982 = vst [vmem:[%s970 + $0x78] sm:%s962] %v981
                %v983 = vld [vmem:[%s969 + $0x30] sm:%s962]
                %984 = vst [vmem:[%s970 + $0x90] sm:%s962] %v983
                %v985 = vld [vmem:[%s969 + $0x38] sm:%s962]
                %986 = vst [vmem:[%s970 + $0xa8] sm:%s962] %v985
                %v987 = vld [vmem:[%s969 + $0x40] sm:%s962]
                %988 = vst [vmem:[%s970 + $0xc0] sm:%s962] %v987
                %v989 = vld [vmem:[%s969 + $0x48] sm:%s962]
                %990 = vst [vmem:[%s970 + $0xd8] sm:%s962] %v989
                %v991 = vld [vmem:[%s969 + $0x50] sm:%s962]
                %992 = vst [vmem:[%s970 + $0xf0] sm:%s962] %v991
                %v993 = vld [vmem:[%s969 + $0x58] sm:%s962]
                %994 = vst [vmem:[%s970 + $0x108] sm:%s962] %v993
                %v995 = vld [vmem:[%s969 + $0x60] sm:%s962]
                %996 = vst [vmem:[%s970 + $0x120] sm:%s962] %v995
                %v997 = vld [vmem:[%s969 + $0x68] sm:%s962]
                %998 = vst [vmem:[%s970 + $0x138] sm:%s962] %v997
                %v999 = vld [vmem:[%s969 + $0x70] sm:%s962]
                %1000 = vst [vmem:[%s970 + $0x150] sm:%s962] %v999
                %v1001 = vld [vmem:[%s969 + $0x78] sm:%s962]
                %1002 = vst [vmem:[%s970 + $0x168] sm:%s962] %v1001
              $region57: #{mixhop_forward.4} parent=51 // loop_footer
                %s968 = sadd.s32 1, %s964
              $region58: #{mixhop_forward.4} parent=51 // loop_footer_branch
                %963 = sbr.rel target = $region54
              $region59: #{mixhop_forward.4} parent=51 // loop_exit
                _
            $region52: #{mixhop_forward.4} parent=43 // pred_fallthru
              _
          $region44: #{mixhop_forward.4} parent=39 // pred_fallthru
            _
          %1047 = vnop
        $region40: #{mixhop_forward.4} parent=27 // pred_fallthru
          _
        // Predicated region
        $region75: #{mixhop_forward.4} parent=27 // pred_check
          %p1048 = pneg %p126
        $region76: #{mixhop_forward.4} parent=27 // pred_check_branch
          %1050 = sbr.rel (%p1048) target = $region78
        $region77: #{mixhop_forward.4} parent=27 // pred_region
          %s1051 = smul.u32 16, %s20
        $region78: #{mixhop_forward.4} parent=27 // pred_fallthru
          _
      $region28: #{mixhop_forward.4} parent=5 // pred_fallthru
        _
      %p1052 = scmp.le.s32.totalorder 2, %s11
      // Predicated region
      $region79: #{mixhop_forward.4} parent=5 // pred_check
        %p1053 = pneg %p1052
      $region80: #{mixhop_forward.4} parent=5 // pred_check_branch
        %1055 = sbr.rel (%p1053) target = $region82
      $region81: #{mixhop_forward.4} parent=5 // pred_region
        %s1056 = ssub.s32 %s11, 2
        // Predicated region
        $region83: #{mixhop_forward.4} parent=81 // pred_check
          %p1057 = pneg %p106
        $region84: #{mixhop_forward.4} parent=81 // pred_check_branch
          %1059 = sbr.rel (%p1057) target = $region86
        $region85: #{mixhop_forward.4} parent=81 // pred_region
          %s1060 = sand.u32 %s91, 1
          %s1061 = sand.u32 %s91, 1
          %s1062 = smul.addr %s1061, 128
          %s1063 = scalar_lea.vmem [#allocation3], %s1062
        $region86: #{mixhop_forward.4} parent=81 // pred_fallthru
          _
        // Predicated region
        $region87: #{mixhop_forward.4} parent=81 // pred_check
          %p1064 = pneg %p132
        $region88: #{mixhop_forward.4} parent=81 // pred_check_branch
          %1066 = sbr.rel (%p1064) target = $region90
        $region89: #{mixhop_forward.4} parent=81 // pred_region
          %s1067 = smul.u32 16, %s22
          %p1068 = scmp.lt.s32.totalorder %s1067, 31
          %s1069 = scalar_select %p1068, %s1067, 31
          %s1070 = smul.addr %s1069, 4
          %s1071 = scalar_lea.vmem %s4, %s1070
        $region90: #{mixhop_forward.4} parent=81 // pred_fallthru
          _
      $region82: #{mixhop_forward.4} parent=5 // pred_fallthru
        _
    $region6: #{mixhop_forward.4} parent=1 // loop_footer
      %s15 = sadd.s32 1, %s11
    $region7: #{mixhop_forward.4} parent=1 // loop_footer_branch
      %10 = sbr.rel target = $region3
    $region8: #{mixhop_forward.4} parent=1 // loop_exit
      _

</llo_original>
